<compile_context>
chip_gen: v6e
topology: v6e:2x2x1
jax: 0.10.0
libtpu: 0.0.40
codegen_flags: <defaults>
</compile_context>

<pallas_src>
import functools
import math

import jax
import jax.numpy as jnp
from jax.experimental import pallas as pl
from jax.experimental.pallas import tpu as pltpu


def _round_up(a, b):
    return (a + b - 1) // b * b


def _chip_budget():
    """Per-generation defaults: (edge-row tile budget, vmem_limit_bytes, has_2_tensorcores)."""
    try:
        kind = jax.devices()[0].device_kind.lower()
    except Exception:
        kind = ""
    if "v7" in kind:                       # v7x: 64 MiB VMEM, 2 TCs / chip
        return 4096, 48 * 1024 * 1024, True
    if "v5p" in kind or "v4" in kind:      # megacore chips, 128 MiB VMEM
        return 8192, 100 * 1024 * 1024, True
    if "v6" in kind or "v5" in kind:       # v5e / v6e: single TC, 128 MiB VMEM
        return 8192, 100 * 1024 * 1024, False
    return 2048, None, False               # unknown / older: stay conservative


def _dgc_kernel(x_ref, rel_ref, adj_ref, w0_ref, b0_ref, w1_ref, b1_ref,
                ek_ref, tk_ref, wlr_ref, blr_ref, out_ref, *, num, fin):
    """Processes one tile of `tile` edge rows (tile % num == 0)."""
    tile = rel_ref.shape[0]
    rows = x_ref.shape[0]                  # tile // num source nodes in this tile
    cdt = w0_ref.dtype                     # MXU input dtype (bf16 or f32)

    adj = adj_ref[...]                     # (tile, 1) f32 -- never rounded

    # WeightNet MLP: Linear -> ReLU -> Linear -> ReLU.
    # MXU inputs in cdt, f32 accumulation, f32 bias + ReLU on the VPU.
    h = jnp.dot(rel_ref[...].astype(cdt), w0_ref[...],
                preferred_element_type=jnp.float32) + b0_ref[...]
    h = jnp.maximum(h, 0.0)
    h = jnp.dot(h.astype(cdt), w1_ref[...],
                preferred_element_type=jnp.float32) + b1_ref[...]
    h = jnp.maximum(h, 0.0)                # (tile, H1) f32

    # Source-node features: the x block holds exactly the `rows` nodes feeding
    # this tile; repeat each row `num` times along the edge (sublane) axis.
    x_src = x_ref[...]                     # (rows, Fin) f32
    x_e = jnp.broadcast_to(x_src[:, None, :], (rows, num, fin)).reshape(tile, fin)

    # Fused tail:
    #   out[n,o] = sum_{k,h} x[n,k] h[n,h] wl[h, k*Fout+o] + sum_k x[n,k] bl[k*Fout+o]
    #            = (x_rep * h_rep) @ wl_r + x @ bl_r
    # x_rep / h_rep come from two small MXU matmuls against static 0/1 expansion
    # matrices (rides in the near-idle MXU slot); the elementwise product stays in
    # f32 and z is cast to the MXU dtype exactly once.
    x_rep = jnp.dot(x_e.astype(cdt), ek_ref[...], preferred_element_type=jnp.float32)
    h_rep = jnp.dot(h.astype(cdt), tk_ref[...], preferred_element_type=jnp.float32)
    z = (x_rep * h_rep).astype(cdt)        # (tile, Fin*H1)
    acc = jnp.dot(z, wlr_ref[...], preferred_element_type=jnp.float32)
    acc = acc + jnp.dot(x_e, blr_ref[...], preferred_element_type=jnp.float32)

    # Adjacency mask (padded tail rows carry adj == 0), then a single cast to the
    # (bf16) output stream.
    out_ref[...] = (acc * adj).astype(out_ref.dtype)
    # TODO(synk): dynamic_bias=True branch (second WeightNet added to the messages)
    # not implemented; module default is dynamic_bias=False.


def dynamic_graph_conv_messages(x, adj, rel, params, *, tile_edges=None,
                                compute_dtype=jnp.bfloat16, out_dtype=None):
    """x: (bz, num, Fin), adj: (bz, num, num), rel: (bz, num, num, E)."""
    bz, num, fin = x.shape
    e = rel.shape[-1]
    h1 = params["w1"].shape[-1]
    fout = params["bl"].shape[-1] // fin
    n = bz * num * num
    if out_dtype is None:
        out_dtype = compute_dtype          # bf16 out halves the dominant HBM stream

    rows_budget, vmem_limit, two_tc = _chip_budget()
    if tile_edges is None:
        tile_edges = rows_budget

    # --- tile sizing --------------------------------------------------------
    #   tile % num == 0      -> in-kernel source-node expansion stays block aligned
    #   tile % (8*num) == 0  -> the (tile//num, Fin) x block keeps 8-row sublane alignment
    #   tile % 16 == 0       -> bf16 sublane packing of the output block
    tile_unit = math.lcm(8 * num, 16)
    n_units = pl.cdiv(n, tile_unit)
    want_units = max(1, tile_edges // tile_unit)
    if two_tc and n_units >= 2:
        # keep >= 2 grid steps only where "parallel" actually shards across 2 TCs
        want_units = min(want_units, max(1, n_units // 2))
    tile = min(want_units, n_units) * tile_unit
    n_pad = _round_up(n, tile)
    grid = n_pad // tile
    rows = tile // num

    # --- glue (plain JAX): reshaped views only, no repack / no extra HBM pass.
    rel_flat = rel.reshape(n, e)
    adj_flat = adj.reshape(n, 1).astype(jnp.float32)
    x_nodes = x.reshape(bz * num, fin).astype(jnp.float32)
    if n_pad != n:
        # ragged tail: pad explicitly; adj == 0 on padded rows masks them out.
        rel_flat = jnp.pad(rel_flat, ((0, n_pad - n), (0, 0)))
        adj_flat = jnp.pad(adj_flat, ((0, n_pad - n), (0, 0)))
        x_nodes = jnp.pad(x_nodes, ((0, n_pad // num - bz * num), (0, 0)))

    # WeightNet parameters, (in, out) layout for x @ W + b.  Weights in compute
    # dtype (MXU inputs), biases kept f32 (added after f32 accumulation).
    w0 = params["w0"].astype(compute_dtype)
    w1 = params["w1"].astype(compute_dtype)
    b0 = params["b0"].reshape(1, -1).astype(jnp.float32)
    b1 = params["b1"].reshape(1, -1).astype(jnp.float32)
    # wl_r[k*H1 + h, o] == wl[h, k*Fout + o]  (fused-tail contraction over (k, h))
    wl_r = (params["wl"].reshape(h1, fin, fout).transpose(1, 0, 2)
            .reshape(fin * h1, fout).astype(compute_dtype))
    bl_r = params["bl"].reshape(fin, fout).astype(jnp.float32)
    # Static 0/1 expansion matrices for the fused tail:
    #   ek[k, k*H1 + h] = 1  ->  (x @ ek)[n, k*H1+h] = x[n, k]
    #   tk[h, k*H1 + h] = 1  ->  (h @ tk)[n, k*H1+h] = h[n, h]
    ek = jnp.repeat(jnp.eye(fin, dtype=jnp.float32), h1, axis=1).astype(compute_dtype)
    tk = jnp.tile(jnp.eye(h1, dtype=jnp.float32), (1, fin)).astype(compute_dtype)

    full = lambda a: pl.BlockSpec(a.shape, lambda i: (0, 0))   # resident across grid
    kernel = functools.partial(_dgc_kernel, num=num, fin=fin)
    out = pl.pallas_call(
        kernel,
        out_shape=jax.ShapeDtypeStruct((n_pad, fout), out_dtype),
        grid=(grid,),
        in_specs=[
            pl.BlockSpec((rows, fin), lambda i: (i, 0)),    # x nodes for this tile
            pl.BlockSpec((tile, e), lambda i: (i, 0)),      # rel, straight from HBM
            pl.BlockSpec((tile, 1), lambda i: (i, 0)),      # adj mask (f32)
            full(w0), full(b0), full(w1), full(b1),
            full(ek), full(tk), full(wl_r), full(bl_r),
        ],
        out_specs=pl.BlockSpec((tile, fout), lambda i: (i, 0)),
        compiler_params=pltpu.CompilerParams(
            dimension_semantics=("parallel",),
            vmem_limit_bytes=vmem_limit),
    )(x_nodes, rel_flat, adj_flat, w0, b0, w1, b1, ek, tk, wl_r, bl_r)

    return out[:n].reshape(bz, num, num, fout)


def _reference(x, adj, rel, params):
    """Pure-JAX replica of the PyTorch forward (f32)."""
    bz, num, fin = x.shape
    fout = params["bl"].shape[-1] // fin
    rel_flat = rel.reshape(-1, rel.shape[-1])
    h = jax.nn.relu(rel_flat @ params["w0"] + params["b0"])
    h = jax.nn.relu(h @ params["w1"] + params["b1"])
    w = (h @ params["wl"] + params["bl"]).reshape(bz, num, num, fin, fout)
    msg = jnp.einsum("bif,bijfo->bijo", x, w)
    return msg * adj[..., None]


if __name__ == "__main__":
    # module hyperparameters
    BZ, NUM = 2, 8
    NUM_IN_FEATS, NUM_OUT_FEATS = 4, 8
    NUM_EDGE_IN_FEATS = 6
    WNET_HIDDEN = (32, 32)

    key = jax.random.PRNGKey(0)
    kx, kadj, krel, k0, k1, k2, k3, k4, k5 = jax.random.split(key, 9)

    x = jax.random.normal(kx, (BZ, NUM, NUM_IN_FEATS), jnp.float32)
    adj = (jax.random.uniform(kadj, (BZ, NUM, NUM)) > 0.5).astype(jnp.float32)
    rel = jax.random.normal(krel, (BZ, NUM, NUM, NUM_EDGE_IN_FEATS), jnp.float32)

    # deterministic synthetic WeightNet parameters (stored (in, out) for x @ W + b)
    params = {
        "w0": 0.2 * jax.random.normal(k0, (NUM_EDGE_IN_FEATS, WNET_HIDDEN[0]), jnp.float32),
        "b0": 0.1 * jax.random.normal(k1, (WNET_HIDDEN[0],), jnp.float32),
        "w1": 0.2 * jax.random.normal(k2, (WNET_HIDDEN[0], WNET_HIDDEN[1]), jnp.float32),
        "b1": 0.1 * jax.random.normal(k3, (WNET_HIDDEN[1],), jnp.float32),
        "wl": 0.2 * jax.random.normal(
            k4, (WNET_HIDDEN[1], NUM_IN_FEATS * NUM_OUT_FEATS), jnp.float32),
        "bl": 0.1 * jax.random.normal(k5, (NUM_IN_FEATS * NUM_OUT_FEATS,), jnp.float32),
    }

    ref = _reference(x, adj, rel, params)

    # 1) exact-path run (f32 end to end, f32 output): validates the fused-tail
    #    algebra, 0/1 expansion matmuls, blocked x prefetch and masking at tight
    #    tolerance.
    out_f32 = jax.block_until_ready(
        dynamic_graph_conv_messages(x, adj, rel, params, compute_dtype=jnp.float32))
    assert out_f32.shape == (BZ, NUM, NUM, NUM_OUT_FEATS)
    assert jnp.allclose(out_f32, ref, rtol=1e-3, atol=1e-3), \
        float(jnp.max(jnp.abs(out_f32 - ref)))

    # 2) performance configuration: bf16 MXU inputs + bf16 output stream, f32
    #    accumulation and f32 elementwise math (looser tolerance due to bf16).
    out = jax.block_until_ready(dynamic_graph_conv_messages(x, adj, rel, params))
    assert out.shape == (BZ, NUM, NUM, NUM_OUT_FEATS)
    assert out.dtype == jnp.bfloat16
    assert jnp.allclose(out, ref, rtol=5e-2, atol=5e-2), \
        float(jnp.max(jnp.abs(out - ref)))

    print("KERNEL_OK")
</pallas_src>

<mosaic_0001>
module attributes {stable_mosaic.version = 11 : i64} {
  func.func @_dgc_kernel(%arg0: i32, %arg1: memref<16x4xf32, #tpu.memory_space<vmem>>, %arg2: memref<128x6xf32, #tpu.memory_space<vmem>>, %arg3: memref<128x1xf32, #tpu.memory_space<vmem>>, %arg4: memref<6x32xf32, #tpu.memory_space<vmem>>, %arg5: memref<1x32xf32, #tpu.memory_space<vmem>>, %arg6: memref<32x32xf32, #tpu.memory_space<vmem>>, %arg7: memref<1x32xf32, #tpu.memory_space<vmem>>, %arg8: memref<4x128xf32, #tpu.memory_space<vmem>>, %arg9: memref<32x128xf32, #tpu.memory_space<vmem>>, %arg10: memref<128x8xf32, #tpu.memory_space<vmem>>, %arg11: memref<4x8xf32, #tpu.memory_space<vmem>>, %arg12: memref<128x8xf32, #tpu.memory_space<vmem>>) attributes {dimension_semantics = [#tpu.dimension_semantics<parallel>], iteration_bounds = array<i64: 1>, scalar_prefetch = 0 : i64, scratch_operands = 0 : i64, tpu.core_type = #tpu.core_type<tc>, window_params = [{transform_indices = @transform_0, window_bounds = array<i64: 16, 4>}, {transform_indices = @transform_1, window_bounds = array<i64: 128, 6>}, {transform_indices = @transform_2, window_bounds = array<i64: 128, 1>}, {pipeline_mode = #tpu.pipeline_mode<synchronous>, transform_indices = @transform_3, window_bounds = array<i64: 6, 32>}, {pipeline_mode = #tpu.pipeline_mode<synchronous>, transform_indices = @transform_4, window_bounds = array<i64: 1, 32>}, {pipeline_mode = #tpu.pipeline_mode<synchronous>, transform_indices = @transform_5, window_bounds = array<i64: 32, 32>}, {pipeline_mode = #tpu.pipeline_mode<synchronous>, transform_indices = @transform_6, window_bounds = array<i64: 1, 32>}, {pipeline_mode = #tpu.pipeline_mode<synchronous>, transform_indices = @transform_7, window_bounds = array<i64: 4, 128>}, {pipeline_mode = #tpu.pipeline_mode<synchronous>, transform_indices = @transform_8, window_bounds = array<i64: 32, 128>}, {pipeline_mode = #tpu.pipeline_mode<synchronous>, transform_indices = @transform_9, window_bounds = array<i64: 128, 8>}, {pipeline_mode = #tpu.pipeline_mode<synchronous>, transform_indices = @transform_10, window_bounds = array<i64: 4, 8>}, {transform_indices = @transform_11, window_bounds = array<i64: 128, 8>}]} {
    %c0 = arith.constant 0 : index
    %c0_0 = arith.constant 0 : index
    %0 = vector.load %arg3[%c0, %c0_0] : memref<128x1xf32, #tpu.memory_space<vmem>>, vector<128x1xf32>
    %c0_1 = arith.constant 0 : index
    %c0_2 = arith.constant 0 : index
    %1 = vector.load %arg2[%c0_1, %c0_2] : memref<128x6xf32, #tpu.memory_space<vmem>>, vector<128x6xf32>
    %c0_3 = arith.constant 0 : index
    %c0_4 = arith.constant 0 : index
    %2 = vector.load %arg4[%c0_3, %c0_4] : memref<6x32xf32, #tpu.memory_space<vmem>>, vector<6x32xf32>
    %cst = arith.constant dense<0.000000e+00> : vector<128x32xf32>
    %3 = tpu.matmul %1, %2, %cst {dimension_numbers = #tpu.dot_dimension_numbers<[1], [0], [0], [1], [0, 0, 1, 1], [], []>} : vector<128x6xf32>, vector<6x32xf32>, vector<128x32xf32> -> vector<128x32xf32>
    %c0_5 = arith.constant 0 : index
    %c0_6 = arith.constant 0 : index
    %4 = vector.load %arg5[%c0_5, %c0_6] : memref<1x32xf32, #tpu.memory_space<vmem>>, vector<1x32xf32>
    %5 = vector.broadcast %4 : vector<1x32xf32> to vector<128x32xf32>
    %6 = arith.addf %3, %5 : vector<128x32xf32>
    %cst_7 = arith.constant 0.000000e+00 : f32
    %7 = vector.broadcast %cst_7 : f32 to vector<128x32xf32>
    %8 = arith.maximumf %6, %7 : vector<128x32xf32>
    %c0_8 = arith.constant 0 : index
    %c0_9 = arith.constant 0 : index
    %9 = vector.load %arg6[%c0_8, %c0_9] : memref<32x32xf32, #tpu.memory_space<vmem>>, vector<32x32xf32>
    %cst_10 = arith.constant dense<0.000000e+00> : vector<128x32xf32>
    %10 = tpu.matmul %8, %9, %cst_10 {dimension_numbers = #tpu.dot_dimension_numbers<[1], [0], [0], [1], [0, 0, 1, 1], [], []>} : vector<128x32xf32>, vector<32x32xf32>, vector<128x32xf32> -> vector<128x32xf32>
    %c0_11 = arith.constant 0 : index
    %c0_12 = arith.constant 0 : index
    %11 = vector.load %arg7[%c0_11, %c0_12] : memref<1x32xf32, #tpu.memory_space<vmem>>, vector<1x32xf32>
    %12 = vector.broadcast %11 : vector<1x32xf32> to vector<128x32xf32>
    %13 = arith.addf %10, %12 : vector<128x32xf32>
    %cst_13 = arith.constant 0.000000e+00 : f32
    %14 = vector.broadcast %cst_13 : f32 to vector<128x32xf32>
    %15 = arith.maximumf %13, %14 : vector<128x32xf32>
    %c0_14 = arith.constant 0 : index
    %c0_15 = arith.constant 0 : index
    %16 = vector.load %arg1[%c0_14, %c0_15] : memref<16x4xf32, #tpu.memory_space<vmem>>, vector<16x4xf32>
    %17 = vector.shape_cast %16 : vector<16x4xf32> to vector<16x1x4xf32>
    %18 = vector.shape_cast %17 : vector<16x1x4xf32> to vector<16x1x4xf32>
    %19 = vector.broadcast %18 : vector<16x1x4xf32> to vector<16x8x4xf32>
    %20 = vector.shape_cast %19 : vector<16x8x4xf32> to vector<128x4xf32>
    %c0_16 = arith.constant 0 : index
    %c0_17 = arith.constant 0 : index
    %21 = vector.load %arg8[%c0_16, %c0_17] : memref<4x128xf32, #tpu.memory_space<vmem>>, vector<4x128xf32>
    %cst_18 = arith.constant dense<0.000000e+00> : vector<128x128xf32>
    %22 = tpu.matmul %20, %21, %cst_18 {dimension_numbers = #tpu.dot_dimension_numbers<[1], [0], [0], [1], [0, 0, 1, 1], [], []>} : vector<128x4xf32>, vector<4x128xf32>, vector<128x128xf32> -> vector<128x128xf32>
    %c0_19 = arith.constant 0 : index
    %c0_20 = arith.constant 0 : index
    %23 = vector.load %arg9[%c0_19, %c0_20] : memref<32x128xf32, #tpu.memory_space<vmem>>, vector<32x128xf32>
    %cst_21 = arith.constant dense<0.000000e+00> : vector<128x128xf32>
    %24 = tpu.matmul %15, %23, %cst_21 {dimension_numbers = #tpu.dot_dimension_numbers<[1], [0], [0], [1], [0, 0, 1, 1], [], []>} : vector<128x32xf32>, vector<32x128xf32>, vector<128x128xf32> -> vector<128x128xf32>
    %25 = arith.mulf %22, %24 : vector<128x128xf32>
    %c0_22 = arith.constant 0 : index
    %c0_23 = arith.constant 0 : index
    %26 = vector.load %arg10[%c0_22, %c0_23] : memref<128x8xf32, #tpu.memory_space<vmem>>, vector<128x8xf32>
    %cst_24 = arith.constant dense<0.000000e+00> : vector<128x8xf32>
    %27 = tpu.matmul %25, %26, %cst_24 {dimension_numbers = #tpu.dot_dimension_numbers<[1], [0], [0], [1], [0, 0, 1, 1], [], []>} : vector<128x128xf32>, vector<128x8xf32>, vector<128x8xf32> -> vector<128x8xf32>
    %c0_25 = arith.constant 0 : index
    %c0_26 = arith.constant 0 : index
    %28 = vector.load %arg11[%c0_25, %c0_26] : memref<4x8xf32, #tpu.memory_space<vmem>>, vector<4x8xf32>
    %cst_27 = arith.constant dense<0.000000e+00> : vector<128x8xf32>
    %29 = tpu.matmul %20, %28, %cst_27 {dimension_numbers = #tpu.dot_dimension_numbers<[1], [0], [0], [1], [0, 0, 1, 1], [], []>} : vector<128x4xf32>, vector<4x8xf32>, vector<128x8xf32> -> vector<128x8xf32>
    %30 = arith.addf %27, %29 : vector<128x8xf32>
    %31 = vector.broadcast %0 : vector<128x1xf32> to vector<128x8xf32>
    %32 = arith.mulf %30, %31 : vector<128x8xf32>
    %c0_28 = arith.constant 0 : index
    %c0_29 = arith.constant 0 : index
    %33 = vector.load %arg12[%c0_28, %c0_29] : memref<128x8xf32, #tpu.memory_space<vmem>>, vector<128x8xf32>
    tpu.vector_store %arg12[%c0_28, %c0_29], %32 {strides = array<i32>} : memref<128x8xf32, #tpu.memory_space<vmem>>, vector<128x8xf32>,
    return
  }
  func.func @transform_0(%arg0: i32) -> (i32, i32) {
    %c0_i32 = arith.constant 0 : i32
    %c0_i32_0 = arith.constant 0 : i32
    return %arg0, %c0_i32 : i32, i32
  }
  func.func @transform_1(%arg0: i32) -> (i32, i32) {
    %c0_i32 = arith.constant 0 : i32
    %c0_i32_0 = arith.constant 0 : i32
    return %arg0, %c0_i32 : i32, i32
  }
  func.func @transform_2(%arg0: i32) -> (i32, i32) {
    %c0_i32 = arith.constant 0 : i32
    %c0_i32_0 = arith.constant 0 : i32
    return %arg0, %c0_i32 : i32, i32
  }
  func.func @transform_3(%arg0: i32) -> (i32, i32) {
    %c0_i32 = arith.constant 0 : i32
    %c0_i32_0 = arith.constant 0 : i32
    %c0_i32_1 = arith.constant 0 : i32
    return %c0_i32, %c0_i32_0 : i32, i32
  }
  func.func @transform_4(%arg0: i32) -> (i32, i32) {
    %c0_i32 = arith.constant 0 : i32
    %c0_i32_0 = arith.constant 0 : i32
    %c0_i32_1 = arith.constant 0 : i32
    return %c0_i32, %c0_i32_0 : i32, i32
  }
  func.func @transform_5(%arg0: i32) -> (i32, i32) {
    %c0_i32 = arith.constant 0 : i32
    %c0_i32_0 = arith.constant 0 : i32
    %c0_i32_1 = arith.constant 0 : i32
    return %c0_i32, %c0_i32_0 : i32, i32
  }
  func.func @transform_6(%arg0: i32) -> (i32, i32) {
    %c0_i32 = arith.constant 0 : i32
    %c0_i32_0 = arith.constant 0 : i32
    %c0_i32_1 = arith.constant 0 : i32
    return %c0_i32, %c0_i32_0 : i32, i32
  }
  func.func @transform_7(%arg0: i32) -> (i32, i32) {
    %c0_i32 = arith.constant 0 : i32
    %c0_i32_0 = arith.constant 0 : i32
    %c0_i32_1 = arith.constant 0 : i32
    return %c0_i32, %c0_i32_0 : i32, i32
  }
  func.func @transform_8(%arg0: i32) -> (i32, i32) {
    %c0_i32 = arith.constant 0 : i32
    %c0_i32_0 = arith.constant 0 : i32
    %c0_i32_1 = arith.constant 0 : i32
    return %c0_i32, %c0_i32_0 : i32, i32
  }
  func.func @transform_9(%arg0: i32) -> (i32, i32) {
    %c0_i32 = arith.constant 0 : i32
    %c0_i32_0 = arith.constant 0 : i32
    %c0_i32_1 = arith.constant 0 : i32
    return %c0_i32, %c0_i32_0 : i32, i32
  }
  func.func @transform_10(%arg0: i32) -> (i32, i32) {
    %c0_i32 = arith.constant 0 : i32
    %c0_i32_0 = arith.constant 0 : i32
    %c0_i32_1 = arith.constant 0 : i32
    return %c0_i32, %c0_i32_0 : i32, i32
  }
  func.func @transform_11(%arg0: i32) -> (i32, i32) {
    %c0_i32 = arith.constant 0 : i32
    %c0_i32_0 = arith.constant 0 : i32
    return %arg0, %c0_i32 : i32, i32
  }
}

</mosaic_0001>

<llo_original>
// kernel: tpu_custom_call.1
$region0: #{tpu_custom_call.1}
  #allocation0 [shape = 'u32[]', space=smem, size = 0x4, offset = 0x4, fixed_abs, tag = 'smem constant byte address 0x4 - core index']
  #allocation1 [shape = 'u32[144,128]{1,0:T(1,128)}', space=vmem, size = 0x12000, scoped, tag = 'internal scratch']
  %s0 = inlined_call_operand.vmem [shape: f32[16,4], index: 0, kind: input, shape index: {}]
  %s1 = inlined_call_operand.vmem [shape: f32[128,6], index: 1, kind: input, shape index: {}]
  %s2 = inlined_call_operand.vmem [shape: f32[128,1], index: 2, kind: input, shape index: {}]
  %s3 = inlined_call_operand.vmem [shape: f32[6,32], index: 3, kind: input, shape index: {}]
  %s4 = inlined_call_operand.vmem [shape: f32[1,32], index: 4, kind: input, shape index: {}]
  %s5 = inlined_call_operand.vmem [shape: f32[32,32], index: 5, kind: input, shape index: {}]
  %s6 = inlined_call_operand.vmem [shape: f32[1,32], index: 6, kind: input, shape index: {}]
  %s7 = inlined_call_operand.vmem [shape: f32[4,128], index: 7, kind: input, shape index: {}]
  %s8 = inlined_call_operand.vmem [shape: f32[32,128], index: 8, kind: input, shape index: {}]
  %s9 = inlined_call_operand.vmem [shape: f32[128,8], index: 9, kind: input, shape index: {}]
  %s10 = inlined_call_operand.vmem [shape: f32[4,8], index: 10, kind: input, shape index: {}]
  %s11 = inlined_call_operand.vmem [shape: f32[128,8], index: 11, kind: output, shape index: {}]
  %s12 = sld [smem:[#allocation0]]
  $region54: #{tpu_custom_call.1} parent=0
    _
  %s14 = ssub.s32 1, %s12
  %s15 = scalar_select 0, %s14, %s12
  // Predicated region
  $region2: #{tpu_custom_call.1} parent=0 // pred_check
    _
  $region3: #{tpu_custom_call.1} parent=0 // pred_check_branch
    %17 = sbr.rel (0) target = $region5
  $region4: #{tpu_custom_call.1} parent=0 // pred_region
    _
  $region5: #{tpu_custom_call.1} parent=0 // pred_fallthru
    _
  // Predicated region
  $region6: #{tpu_custom_call.1} parent=0 // pred_check
    _
  $region7: #{tpu_custom_call.1} parent=0 // pred_check_branch
    %19 = sbr.rel (0) target = $region9
  $region8: #{tpu_custom_call.1} parent=0 // pred_region
    _
  $region9: #{tpu_custom_call.1} parent=0 // pred_fallthru
    _
  // Predicated region
  $region10: #{tpu_custom_call.1} parent=0 // pred_check
    _
  $region11: #{tpu_custom_call.1} parent=0 // pred_check_branch
    %21 = sbr.rel (0) target = $region13
  $region12: #{tpu_custom_call.1} parent=0 // pred_region
    _
  $region13: #{tpu_custom_call.1} parent=0 // pred_fallthru
    _
  // Predicated region
  $region14: #{tpu_custom_call.1} parent=0 // pred_check
    _
  $region15: #{tpu_custom_call.1} parent=0 // pred_check_branch
    %23 = sbr.rel (0) target = $region17
  $region16: #{tpu_custom_call.1} parent=0 // pred_region
    _
  $region17: #{tpu_custom_call.1} parent=0 // pred_fallthru
    _
  // Predicated region
  $region18: #{tpu_custom_call.1} parent=0 // pred_check
    _
  $region19: #{tpu_custom_call.1} parent=0 // pred_check_branch
    %25 = sbr.rel (0) target = $region21
  $region20: #{tpu_custom_call.1} parent=0 // pred_region
    _
  $region21: #{tpu_custom_call.1} parent=0 // pred_fallthru
    _
  // Predicated region
  $region22: #{tpu_custom_call.1} parent=0 // pred_check
    _
  $region23: #{tpu_custom_call.1} parent=0 // pred_check_branch
    %27 = sbr.rel (0) target = $region25
  $region24: #{tpu_custom_call.1} parent=0 // pred_region
    _
  $region25: #{tpu_custom_call.1} parent=0 // pred_fallthru
    _
  // Predicated region
  $region26: #{tpu_custom_call.1} parent=0 // pred_check
    _
  $region27: #{tpu_custom_call.1} parent=0 // pred_check_branch
    %29 = sbr.rel (0) target = $region29
  $region28: #{tpu_custom_call.1} parent=0 // pred_region
    _
  $region29: #{tpu_custom_call.1} parent=0 // pred_fallthru
    _
  // Predicated region
  $region30: #{tpu_custom_call.1} parent=0 // pred_check
    _
  $region31: #{tpu_custom_call.1} parent=0 // pred_check_branch
    %31 = sbr.rel (0) target = $region33
  $region32: #{tpu_custom_call.1} parent=0 // pred_region
    _
  $region33: #{tpu_custom_call.1} parent=0 // pred_fallthru
    _
  // Predicated region
  $region34: #{tpu_custom_call.1} parent=0 // pred_check
    _
  $region35: #{tpu_custom_call.1} parent=0 // pred_check_branch
    %33 = sbr.rel (0) target = $region37
  $region36: #{tpu_custom_call.1} parent=0 // pred_region
    _
  $region37: #{tpu_custom_call.1} parent=0 // pred_fallthru
    _
  // Predicated region
  $region38: #{tpu_custom_call.1} parent=0 // pred_check
    _
  $region39: #{tpu_custom_call.1} parent=0 // pred_check_branch
    %35 = sbr.rel (0) target = $region41
  $region40: #{tpu_custom_call.1} parent=0 // pred_region
    _
  $region41: #{tpu_custom_call.1} parent=0 // pred_fallthru
    _
  // Predicated region
  $region42: #{tpu_custom_call.1} parent=0 // pred_check
    _
  $region43: #{tpu_custom_call.1} parent=0 // pred_check_branch
    %37 = sbr.rel (0) target = $region45
  $region44: #{tpu_custom_call.1} parent=0 // pred_region
    _
  $region45: #{tpu_custom_call.1} parent=0 // pred_fallthru
    _
  %v38 = vld [vmem:[%s2] sm:$0xff]
  %v39 = vld [vmem:[%s2 + $0x8] sm:$0xff]
  %v40 = vld [vmem:[%s2 + $0x10] sm:$0xff]
  %v41 = vld [vmem:[%s2 + $0x18] sm:$0xff]
  %v42 = vld [vmem:[%s2 + $0x20] sm:$0xff]
  %v43 = vld [vmem:[%s2 + $0x28] sm:$0xff]
  %v44 = vld [vmem:[%s2 + $0x30] sm:$0xff]
  %v45 = vld [vmem:[%s2 + $0x38] sm:$0xff]
  %v46 = vld [vmem:[%s2 + $0x40] sm:$0xff]
  %v47 = vld [vmem:[%s2 + $0x48] sm:$0xff]
  %v48 = vld [vmem:[%s2 + $0x50] sm:$0xff]
  %v49 = vld [vmem:[%s2 + $0x58] sm:$0xff]
  %v50 = vld [vmem:[%s2 + $0x60] sm:$0xff]
  %v51 = vld [vmem:[%s2 + $0x68] sm:$0xff]
  %v52 = vld [vmem:[%s2 + $0x70] sm:$0xff]
  %v53 = vld [vmem:[%s2 + $0x78] sm:$0xff]
  %v54 = vld [vmem:[%s1] sm:$0xff]
  %v55 = vld [vmem:[%s1 + $0x8] sm:$0xff]
  %v56 = vld [vmem:[%s1 + $0x10] sm:$0xff]
  %v57 = vld [vmem:[%s1 + $0x18] sm:$0xff]
  %v58 = vld [vmem:[%s1 + $0x20] sm:$0xff]
  %v59 = vld [vmem:[%s1 + $0x28] sm:$0xff]
  %v60 = vld [vmem:[%s1 + $0x30] sm:$0xff]
  %v61 = vld [vmem:[%s1 + $0x38] sm:$0xff]
  %v62 = vld [vmem:[%s1 + $0x40] sm:$0xff]
  %v63 = vld [vmem:[%s1 + $0x48] sm:$0xff]
  %v64 = vld [vmem:[%s1 + $0x50] sm:$0xff]
  %v65 = vld [vmem:[%s1 + $0x58] sm:$0xff]
  %v66 = vld [vmem:[%s1 + $0x60] sm:$0xff]
  %v67 = vld [vmem:[%s1 + $0x68] sm:$0xff]
  %v68 = vld [vmem:[%s1 + $0x70] sm:$0xff]
  %v69 = vld [vmem:[%s1 + $0x78] sm:$0xff]
  %v70 = vld [vmem:[%s3] sm:$0x3f]
  %v71 = vld [vmem:[%s4] sm:$0x1]
  %v73 = vlaneseq
  %v74 = vshrl.u32 %v73, 7
  %v75 = vsub.s32 0, %v74
  %v76 = vrot.slane %v71, %v75
  %vm78 = vcmask 48128
  %v80 = vsel %vm78, %v54, 0
  %v83 = vsel %vm78, %v55, 0
  %v86 = vsel %vm78, %v56, 0
  %v89 = vsel %vm78, %v57, 0
  %v92 = vsel %vm78, %v58, 0
  %v95 = vsel %vm78, %v59, 0
  %v98 = vsel %vm78, %v60, 0
  %v101 = vsel %vm78, %v61, 0
  %v104 = vsel %vm78, %v62, 0
  %v107 = vsel %vm78, %v63, 0
  %v110 = vsel %vm78, %v64, 0
  %v113 = vsel %vm78, %v65, 0
  %v116 = vsel %vm78, %v66, 0
  %v119 = vsel %vm78, %v67, 0
  %v122 = vsel %vm78, %v68, 0
  %v125 = vsel %vm78, %v69, 0
  %vm127 = vcmask 1045504
  %v129 = vsel %vm127, %v70, 0
  %131 = vmatprep.subr.mxu0 0.0
  %132 = vmatpush1.msra.mxu0 0.0
  %133 = vmatprep.subr.mxu0 0.0
  %134 = vmatpush1.msra.mxu0 0.0
  %135 = vmatprep.subr.mxu0 0.0
  %136 = vmatpush1.msra.mxu0 0.0
  %137 = vmatprep.subr.mxu0 0.0
  %138 = vmatpush1.msra.mxu0 0.0
  %139 = vmatprep.subr.mxu0 0.0
  %140 = vmatpush1.msra.mxu0 0.0
  %141 = vmatprep.subr.mxu0 0.0
  %142 = vmatpush1.msra.mxu0 0.0
  %143 = vmatprep.subr.mxu0 0.0
  %144 = vmatpush1.msra.mxu0 0.0
  %145 = vmatprep.subr.mxu0 0.0
  %146 = vmatpush1.msra.mxu0 0.0
  %147 = vmatprep.subr.mxu0 0.0
  %148 = vmatpush1.msra.mxu0 0.0
  %149 = vmatprep.subr.mxu0 0.0
  %150 = vmatpush1.msra.mxu0 0.0
  %151 = vmatprep.subr.mxu0 0.0
  %152 = vmatpush1.msra.mxu0 0.0
  %153 = vmatprep.subr.mxu0 0.0
  %154 = vmatpush1.msra.mxu0 0.0
  %155 = vmatprep.subr.mxu0 0.0
  %156 = vmatpush1.msra.mxu0 0.0
  %157 = vmatprep.subr.mxu0 0.0
  %158 = vmatpush1.msra.mxu0 0.0
  %159 = vmatprep.subr.mxu0 0.0
  %160 = vmatpush1.msra.mxu0 0.0
  %161 = vmatprep.subr.mxu0 0.0
  %162 = vmatpush1.msra.mxu0 %v129
  %163 = vmatprep.subr.mxu0 0.0
  %164 = vmatpush2.msra.mxu0 0.0
  %165 = vmatprep.subr.mxu0 0.0
  %166 = vmatpush2.msra.mxu0 0.0
  %167 = vmatprep.subr.mxu0 0.0
  %168 = vmatpush2.msra.mxu0 0.0
  %169 = vmatprep.subr.mxu0 0.0
  %170 = vmatpush2.msra.mxu0 0.0
  %171 = vmatprep.subr.mxu0 0.0
  %172 = vmatpush2.msra.mxu0 0.0
  %173 = vmatprep.subr.mxu0 0.0
  %174 = vmatpush2.msra.mxu0 0.0
  %175 = vmatprep.subr.mxu0 0.0
  %176 = vmatpush2.msra.mxu0 0.0
  %177 = vmatprep.subr.mxu0 0.0
  %178 = vmatpush2.msra.mxu0 0.0
  %179 = vmatprep.subr.mxu0 0.0
  %180 = vmatpush2.msra.mxu0 0.0
  %181 = vmatprep.subr.mxu0 0.0
  %182 = vmatpush2.msra.mxu0 0.0
  %183 = vmatprep.subr.mxu0 0.0
  %184 = vmatpush2.msra.mxu0 0.0
  %185 = vmatprep.subr.mxu0 0.0
  %186 = vmatpush2.msra.mxu0 0.0
  %187 = vmatprep.subr.mxu0 0.0
  %188 = vmatpush2.msra.mxu0 0.0
  %189 = vmatprep.subr.mxu0 0.0
  %190 = vmatpush2.msra.mxu0 0.0
  %191 = vmatprep.subr.mxu0 0.0
  %192 = vmatpush2.msra.mxu0 0.0
  %193 = vmatprep.subr.mxu0 0.0
  %194 = vmatpush2.msra.mxu0 0.0
  %195 = vmatprep.mubr.f32.mxu0 0.0
  %196 = vmatmul.mubr.f32.gmra.mxu0 %v80
  %v197 = vpop.f32.mrf.mxu0
  %v198 = vadd.f32 %v76, %v197
  %v199 = vpop.f32.mrf.mxu0
  %200 = vmatprep.mubr.f32.mxu0 0.0
  %201 = vmatmul.mubr.f32.gmra.mxu0 %v83
  %v202 = vpop.f32.mrf.mxu0
  %v203 = vadd.f32 %v76, %v202
  %v204 = vpop.f32.mrf.mxu0
  %205 = vmatprep.mubr.f32.mxu0 0.0
  %206 = vmatmul.mubr.f32.gmra.mxu0 %v86
  %v207 = vpop.f32.mrf.mxu0
  %v208 = vadd.f32 %v76, %v207
  %v209 = vpop.f32.mrf.mxu0
  %210 = vmatprep.mubr.f32.mxu0 0.0
  %211 = vmatmul.mubr.f32.gmra.mxu0 %v89
  %v212 = vpop.f32.mrf.mxu0
  %v213 = vadd.f32 %v76, %v212
  %v214 = vpop.f32.mrf.mxu0
  %215 = vmatprep.mubr.f32.mxu0 0.0
  %216 = vmatmul.mubr.f32.gmra.mxu0 %v92
  %v217 = vpop.f32.mrf.mxu0
  %v218 = vadd.f32 %v76, %v217
  %v219 = vpop.f32.mrf.mxu0
  %220 = vmatprep.mubr.f32.mxu0 0.0
  %221 = vmatmul.mubr.f32.gmra.mxu0 %v95
  %v222 = vpop.f32.mrf.mxu0
  %v223 = vadd.f32 %v76, %v222
  %v224 = vpop.f32.mrf.mxu0
  %225 = vmatprep.mubr.f32.mxu0 0.0
  %226 = vmatmul.mubr.f32.gmra.mxu0 %v98
  %v227 = vpop.f32.mrf.mxu0
  %v228 = vadd.f32 %v76, %v227
  %v229 = vpop.f32.mrf.mxu0
  %230 = vmatprep.mubr.f32.mxu0 0.0
  %231 = vmatmul.mubr.f32.gmra.mxu0 %v101
  %v232 = vpop.f32.mrf.mxu0
  %v233 = vadd.f32 %v76, %v232
  %v234 = vpop.f32.mrf.mxu0
  %235 = vmatprep.mubr.f32.mxu0 0.0
  %236 = vmatmul.mubr.f32.gmra.mxu0 %v104
  %v237 = vpop.f32.mrf.mxu0
  %v238 = vadd.f32 %v76, %v237
  %v239 = vpop.f32.mrf.mxu0
  %240 = vmatprep.mubr.f32.mxu0 0.0
  %241 = vmatmul.mubr.f32.gmra.mxu0 %v107
  %v242 = vpop.f32.mrf.mxu0
  %v243 = vadd.f32 %v76, %v242
  %v244 = vpop.f32.mrf.mxu0
  %245 = vmatprep.mubr.f32.mxu0 0.0
  %246 = vmatmul.mubr.f32.gmra.mxu0 %v110
  %v247 = vpop.f32.mrf.mxu0
  %v248 = vadd.f32 %v76, %v247
  %v249 = vpop.f32.mrf.mxu0
  %250 = vmatprep.mubr.f32.mxu0 0.0
  %251 = vmatmul.mubr.f32.gmra.mxu0 %v113
  %v252 = vpop.f32.mrf.mxu0
  %v253 = vadd.f32 %v76, %v252
  %v254 = vpop.f32.mrf.mxu0
  %255 = vmatprep.mubr.f32.mxu0 0.0
  %256 = vmatmul.mubr.f32.gmra.mxu0 %v116
  %v257 = vpop.f32.mrf.mxu0
  %v258 = vadd.f32 %v76, %v257
  %v259 = vpop.f32.mrf.mxu0
  %260 = vmatprep.mubr.f32.mxu0 0.0
  %261 = vmatmul.mubr.f32.gmra.mxu0 %v119
  %v262 = vpop.f32.mrf.mxu0
  %v263 = vadd.f32 %v76, %v262
  %v264 = vpop.f32.mrf.mxu0
  %265 = vmatprep.mubr.f32.mxu0 0.0
  %266 = vmatmul.mubr.f32.gmra.mxu0 %v122
  %v267 = vpop.f32.mrf.mxu0
  %v268 = vadd.f32 %v76, %v267
  %v269 = vpop.f32.mrf.mxu0
  %270 = vmatprep.mubr.f32.mxu0 0.0
  %271 = vmatmul.mubr.f32.gmra.mxu0 %v125
  %v272 = vpop.f32.mrf.mxu0
  %v273 = vadd.f32 %v76, %v272
  %v274 = vpop.f32.mrf.mxu0
  %275 = vdwg.mxu0
  %v276 = vmax.f32 %v198, 0.0
  %v277 = vmax.f32 %v203, 0.0
  %v278 = vmax.f32 %v208, 0.0
  %v279 = vmax.f32 %v213, 0.0
  %v280 = vmax.f32 %v218, 0.0
  %v281 = vmax.f32 %v223, 0.0
  %v282 = vmax.f32 %v228, 0.0
  %v283 = vmax.f32 %v233, 0.0
  %v284 = vmax.f32 %v238, 0.0
  %v285 = vmax.f32 %v243, 0.0
  %v286 = vmax.f32 %v248, 0.0
  %v287 = vmax.f32 %v253, 0.0
  %v288 = vmax.f32 %v258, 0.0
  %v289 = vmax.f32 %v263, 0.0
  %v290 = vmax.f32 %v268, 0.0
  %v291 = vmax.f32 %v273, 0.0
  %v292 = vld [vmem:[%s5] sm:$0xff]
  %v293 = vld [vmem:[%s5 + $0x8] sm:$0xff]
  %v294 = vld [vmem:[%s5 + $0x10] sm:$0xff]
  %v295 = vld [vmem:[%s5 + $0x18] sm:$0xff]
  %v296 = vld [vmem:[%s6] sm:$0x1]
  %v298 = vlaneseq
  %v299 = vshrl.u32 %v298, 7
  %v300 = vsub.s32 0, %v299
  %v301 = vrot.slane %v296, %v300
  %vm303 = vcmask 261120
  %v305 = vsel %vm303, %v276, 0
  %v308 = vsel %vm303, %v277, 0
  %v311 = vsel %vm303, %v278, 0
  %v314 = vsel %vm303, %v279, 0
  %v317 = vsel %vm303, %v280, 0
  %v320 = vsel %vm303, %v281, 0
  %v323 = vsel %vm303, %v282, 0
  %v326 = vsel %vm303, %v283, 0
  %v329 = vsel %vm303, %v284, 0
  %v332 = vsel %vm303, %v285, 0
  %v335 = vsel %vm303, %v286, 0
  %v338 = vsel %vm303, %v287, 0
  %v341 = vsel %vm303, %v288, 0
  %v344 = vsel %vm303, %v289, 0
  %v347 = vsel %vm303, %v290, 0
  %v350 = vsel %vm303, %v291, 0
  %352 = vmatprep.subr.mxu0 0.0
  %353 = vmatpush1.msra.mxu0 0.0
  %354 = vmatprep.subr.mxu0 0.0
  %355 = vmatpush1.msra.mxu0 0.0
  %356 = vmatprep.subr.mxu0 0.0
  %357 = vmatpush1.msra.mxu0 0.0
  %358 = vmatprep.subr.mxu0 0.0
  %359 = vmatpush1.msra.mxu0 0.0
  %360 = vmatprep.subr.mxu0 0.0
  %361 = vmatpush1.msra.mxu0 0.0
  %362 = vmatprep.subr.mxu0 0.0
  %363 = vmatpush1.msra.mxu0 0.0
  %364 = vmatprep.subr.mxu0 0.0
  %365 = vmatpush1.msra.mxu0 0.0
  %366 = vmatprep.subr.mxu0 0.0
  %367 = vmatpush1.msra.mxu0 0.0
  %368 = vmatprep.subr.mxu0 0.0
  %369 = vmatpush1.msra.mxu0 0.0
  %370 = vmatprep.subr.mxu0 0.0
  %371 = vmatpush1.msra.mxu0 0.0
  %372 = vmatprep.subr.mxu0 0.0
  %373 = vmatpush1.msra.mxu0 0.0
  %374 = vmatprep.subr.mxu0 0.0
  %375 = vmatpush1.msra.mxu0 0.0
  %376 = vmatprep.subr.mxu0 0.0
  %377 = vmatpush1.msra.mxu0 %v295
  %378 = vmatprep.subr.mxu0 0.0
  %379 = vmatpush1.msra.mxu0 %v294
  %380 = vmatprep.subr.mxu0 0.0
  %381 = vmatpush1.msra.mxu0 %v293
  %382 = vmatprep.subr.mxu0 0.0
  %383 = vmatpush1.msra.mxu0 %v292
  %384 = vmatprep.subr.mxu0 0.0
  %385 = vmatpush2.msra.mxu0 0.0
  %386 = vmatprep.subr.mxu0 0.0
  %387 = vmatpush2.msra.mxu0 0.0
  %388 = vmatprep.subr.mxu0 0.0
  %389 = vmatpush2.msra.mxu0 0.0
  %390 = vmatprep.subr.mxu0 0.0
  %391 = vmatpush2.msra.mxu0 0.0
  %392 = vmatprep.subr.mxu0 0.0
  %393 = vmatpush2.msra.mxu0 0.0
  %394 = vmatprep.subr.mxu0 0.0
  %395 = vmatpush2.msra.mxu0 0.0
  %396 = vmatprep.subr.mxu0 0.0
  %397 = vmatpush2.msra.mxu0 0.0
  %398 = vmatprep.subr.mxu0 0.0
  %399 = vmatpush2.msra.mxu0 0.0
  %400 = vmatprep.subr.mxu0 0.0
  %401 = vmatpush2.msra.mxu0 0.0
  %402 = vmatprep.subr.mxu0 0.0
  %403 = vmatpush2.msra.mxu0 0.0
  %404 = vmatprep.subr.mxu0 0.0
  %405 = vmatpush2.msra.mxu0 0.0
  %406 = vmatprep.subr.mxu0 0.0
  %407 = vmatpush2.msra.mxu0 0.0
  %408 = vmatprep.subr.mxu0 0.0
  %409 = vmatpush2.msra.mxu0 0.0
  %410 = vmatprep.subr.mxu0 0.0
  %411 = vmatpush2.msra.mxu0 0.0
  %412 = vmatprep.subr.mxu0 0.0
  %413 = vmatpush2.msra.mxu0 0.0
  %414 = vmatprep.subr.mxu0 0.0
  %415 = vmatpush2.msra.mxu0 0.0
  %416 = vmatprep.mubr.f32.mxu0 0.0
  %417 = vmatmul.mubr.f32.gmra.mxu0 %v305
  %v418 = vpop.f32.mrf.mxu0
  %v419 = vadd.f32 %v301, %v418
  %v420 = vpop.f32.mrf.mxu0
  %421 = vmatprep.mubr.f32.mxu0 0.0
  %422 = vmatmul.mubr.f32.gmra.mxu0 %v308
  %v423 = vpop.f32.mrf.mxu0
  %v424 = vadd.f32 %v301, %v423
  %v425 = vpop.f32.mrf.mxu0
  %426 = vmatprep.mubr.f32.mxu0 0.0
  %427 = vmatmul.mubr.f32.gmra.mxu0 %v311
  %v428 = vpop.f32.mrf.mxu0
  %v429 = vadd.f32 %v301, %v428
  %v430 = vpop.f32.mrf.mxu0
  %431 = vmatprep.mubr.f32.mxu0 0.0
  %432 = vmatmul.mubr.f32.gmra.mxu0 %v314
  %v433 = vpop.f32.mrf.mxu0
  %v434 = vadd.f32 %v301, %v433
  %v435 = vpop.f32.mrf.mxu0
  %436 = vmatprep.mubr.f32.mxu0 0.0
  %437 = vmatmul.mubr.f32.gmra.mxu0 %v317
  %v438 = vpop.f32.mrf.mxu0
  %v439 = vadd.f32 %v301, %v438
  %v440 = vpop.f32.mrf.mxu0
  %441 = vmatprep.mubr.f32.mxu0 0.0
  %442 = vmatmul.mubr.f32.gmra.mxu0 %v320
  %v443 = vpop.f32.mrf.mxu0
  %v444 = vadd.f32 %v301, %v443
  %v445 = vpop.f32.mrf.mxu0
  %446 = vmatprep.mubr.f32.mxu0 0.0
  %447 = vmatmul.mubr.f32.gmra.mxu0 %v323
  %v448 = vpop.f32.mrf.mxu0
  %v449 = vadd.f32 %v301, %v448
  %v450 = vpop.f32.mrf.mxu0
  %451 = vmatprep.mubr.f32.mxu0 0.0
  %452 = vmatmul.mubr.f32.gmra.mxu0 %v326
  %v453 = vpop.f32.mrf.mxu0
  %v454 = vadd.f32 %v301, %v453
  %v455 = vpop.f32.mrf.mxu0
  %456 = vmatprep.mubr.f32.mxu0 0.0
  %457 = vmatmul.mubr.f32.gmra.mxu0 %v329
  %v458 = vpop.f32.mrf.mxu0
  %v459 = vadd.f32 %v301, %v458
  %v460 = vpop.f32.mrf.mxu0
  %461 = vmatprep.mubr.f32.mxu0 0.0
  %462 = vmatmul.mubr.f32.gmra.mxu0 %v332
  %v463 = vpop.f32.mrf.mxu0
  %v464 = vadd.f32 %v301, %v463
  %v465 = vpop.f32.mrf.mxu0
  %466 = vmatprep.mubr.f32.mxu0 0.0
  %467 = vmatmul.mubr.f32.gmra.mxu0 %v335
  %v468 = vpop.f32.mrf.mxu0
  %v469 = vadd.f32 %v301, %v468
  %v470 = vpop.f32.mrf.mxu0
  %471 = vmatprep.mubr.f32.mxu0 0.0
  %472 = vmatmul.mubr.f32.gmra.mxu0 %v338
  %v473 = vpop.f32.mrf.mxu0
  %v474 = vadd.f32 %v301, %v473
  %v475 = vpop.f32.mrf.mxu0
  %476 = vmatprep.mubr.f32.mxu0 0.0
  %477 = vmatmul.mubr.f32.gmra.mxu0 %v341
  %v478 = vpop.f32.mrf.mxu0
  %v479 = vadd.f32 %v301, %v478
  %v480 = vpop.f32.mrf.mxu0
  %481 = vmatprep.mubr.f32.mxu0 0.0
  %482 = vmatmul.mubr.f32.gmra.mxu0 %v344
  %v483 = vpop.f32.mrf.mxu0
  %v484 = vadd.f32 %v301, %v483
  %v485 = vpop.f32.mrf.mxu0
  %486 = vmatprep.mubr.f32.mxu0 0.0
  %487 = vmatmul.mubr.f32.gmra.mxu0 %v347
  %v488 = vpop.f32.mrf.mxu0
  %v489 = vadd.f32 %v301, %v488
  %v490 = vpop.f32.mrf.mxu0
  %491 = vmatprep.mubr.f32.mxu0 0.0
  %492 = vmatmul.mubr.f32.gmra.mxu0 %v350
  %v493 = vpop.f32.mrf.mxu0
  %v494 = vadd.f32 %v301, %v493
  %v495 = vpop.f32.mrf.mxu0
  %496 = vdwg.mxu0
  %v497 = vmax.f32 %v419, 0.0
  %v498 = vmax.f32 %v424, 0.0
  %v499 = vmax.f32 %v429, 0.0
  %v500 = vmax.f32 %v434, 0.0
  %v501 = vmax.f32 %v439, 0.0
  %v502 = vmax.f32 %v444, 0.0
  %v503 = vmax.f32 %v449, 0.0
  %v504 = vmax.f32 %v454, 0.0
  %v505 = vmax.f32 %v459, 0.0
  %v506 = vmax.f32 %v464, 0.0
  %v507 = vmax.f32 %v469, 0.0
  %v508 = vmax.f32 %v474, 0.0
  %v509 = vmax.f32 %v479, 0.0
  %v510 = vmax.f32 %v484, 0.0
  %v511 = vmax.f32 %v489, 0.0
  %v512 = vmax.f32 %v494, 0.0
  %v513 = vld [vmem:[%s0] sm:$0xff]
  %v514 = vld [vmem:[%s0 + $0x8] sm:$0xff]
  %v517 = vcombine.high %v513, %v513
  %v519 = vunpack.c.l.s4 1966171168
  %v520 = vunpack.c.0.s8 %v519
  %v521 = vlaneseq
  %v522 = vshrl.u32 %v521, 7
  %v523 = vsub.s32 %v520, %v522
  %v524 = vrot.slane %v513, %v523
  %v526 = vunpack.c.l.s4 1966171168
  %v527 = vunpack.c.0.s8 %v526
  %v528 = vlaneseq
  %v529 = vshrl.u32 %v528, 7
  %v530 = vsub.s32 %v527, %v529
  %v531 = vrot.slane %v517, %v530
  %v532 = vcombine.high %v524, %v524
  %v533 = vcombine.high %v531, %v531
  %v535 = vunpack.c.l.s4 1966171168
  %v536 = vunpack.c.0.s8 %v535
  %v537 = vlaneseq
  %v538 = vshrl.u32 %v537, 7
  %v539 = vsub.s32 %v536, %v538
  %v540 = vrot.slane %v524, %v539
  %v542 = vunpack.c.l.s4 1966171168
  %v543 = vunpack.c.0.s8 %v542
  %v544 = vlaneseq
  %v545 = vshrl.u32 %v544, 7
  %v546 = vsub.s32 %v543, %v545
  %v547 = vrot.slane %v531, %v546
  %v549 = vunpack.c.l.s4 1966171168
  %v550 = vunpack.c.0.s8 %v549
  %v551 = vlaneseq
  %v552 = vshrl.u32 %v551, 7
  %v553 = vsub.s32 %v550, %v552
  %v554 = vrot.slane %v532, %v553
  %v556 = vunpack.c.l.s4 1966171168
  %v557 = vunpack.c.0.s8 %v556
  %v558 = vlaneseq
  %v559 = vshrl.u32 %v558, 7
  %v560 = vsub.s32 %v557, %v559
  %v561 = vrot.slane %v533, %v560
  %v562 = vcombine.high %v540, %v540
  %v563 = vcombine.high %v547, %v547
  %v564 = vcombine.high %v554, %v554
  %v565 = vcombine.high %v561, %v561
  %v566 = vcombine.high %v514, %v514
  %v568 = vunpack.c.l.s4 1966171168
  %v569 = vunpack.c.0.s8 %v568
  %v570 = vlaneseq
  %v571 = vshrl.u32 %v570, 7
  %v572 = vsub.s32 %v569, %v571
  %v573 = vrot.slane %v514, %v572
  %v575 = vunpack.c.l.s4 1966171168
  %v576 = vunpack.c.0.s8 %v575
  %v577 = vlaneseq
  %v578 = vshrl.u32 %v577, 7
  %v579 = vsub.s32 %v576, %v578
  %v580 = vrot.slane %v566, %v579
  %v581 = vcombine.high %v573, %v573
  %v582 = vcombine.high %v580, %v580
  %v584 = vunpack.c.l.s4 1966171168
  %v585 = vunpack.c.0.s8 %v584
  %v586 = vlaneseq
  %v587 = vshrl.u32 %v586, 7
  %v588 = vsub.s32 %v585, %v587
  %v589 = vrot.slane %v573, %v588
  %v591 = vunpack.c.l.s4 1966171168
  %v592 = vunpack.c.0.s8 %v591
  %v593 = vlaneseq
  %v594 = vshrl.u32 %v593, 7
  %v595 = vsub.s32 %v592, %v594
  %v596 = vrot.slane %v580, %v595
  %v598 = vunpack.c.l.s4 1966171168
  %v599 = vunpack.c.0.s8 %v598
  %v600 = vlaneseq
  %v601 = vshrl.u32 %v600, 7
  %v602 = vsub.s32 %v599, %v601
  %v603 = vrot.slane %v581, %v602
  %v605 = vunpack.c.l.s4 1966171168
  %v606 = vunpack.c.0.s8 %v605
  %v607 = vlaneseq
  %v608 = vshrl.u32 %v607, 7
  %v609 = vsub.s32 %v606, %v608
  %v610 = vrot.slane %v582, %v609
  %v611 = vcombine.high %v589, %v589
  %v612 = vcombine.high %v596, %v596
  %v613 = vcombine.high %v603, %v603
  %v614 = vcombine.high %v610, %v610
  %v615 = vlaneseq
  %v616 = vshrl.u32 %v615, 7
  %v617 = vsub.s32 0, %v616
  %v618 = vrot.slane %v540, %v617
  %v619 = vlaneseq
  %v620 = vshrl.u32 %v619, 7
  %v621 = vsub.s32 0, %v620
  %v622 = vrot.slane %v554, %v621
  %v623 = vlaneseq
  %v624 = vshrl.u32 %v623, 7
  %v625 = vsub.s32 0, %v624
  %v626 = vrot.slane %v562, %v625
  %v627 = vlaneseq
  %v628 = vshrl.u32 %v627, 7
  %v629 = vsub.s32 0, %v628
  %v630 = vrot.slane %v564, %v629
  %v631 = vlaneseq
  %v632 = vshrl.u32 %v631, 7
  %v633 = vsub.s32 0, %v632
  %v634 = vrot.slane %v547, %v633
  %v635 = vlaneseq
  %v636 = vshrl.u32 %v635, 7
  %v637 = vsub.s32 0, %v636
  %v638 = vrot.slane %v561, %v637
  %v639 = vlaneseq
  %v640 = vshrl.u32 %v639, 7
  %v641 = vsub.s32 0, %v640
  %v642 = vrot.slane %v563, %v641
  %v643 = vlaneseq
  %v644 = vshrl.u32 %v643, 7
  %v645 = vsub.s32 0, %v644
  %v646 = vrot.slane %v565, %v645
  %v647 = vlaneseq
  %v648 = vshrl.u32 %v647, 7
  %v649 = vsub.s32 0, %v648
  %v650 = vrot.slane %v589, %v649
  %v651 = vlaneseq
  %v652 = vshrl.u32 %v651, 7
  %v653 = vsub.s32 0, %v652
  %v654 = vrot.slane %v603, %v653
  %v655 = vlaneseq
  %v656 = vshrl.u32 %v655, 7
  %v657 = vsub.s32 0, %v656
  %v658 = vrot.slane %v611, %v657
  %v659 = vlaneseq
  %v660 = vshrl.u32 %v659, 7
  %v661 = vsub.s32 0, %v660
  %v662 = vrot.slane %v613, %v661
  %v663 = vlaneseq
  %v664 = vshrl.u32 %v663, 7
  %v665 = vsub.s32 0, %v664
  %v666 = vrot.slane %v596, %v665
  %v667 = vlaneseq
  %v668 = vshrl.u32 %v667, 7
  %v669 = vsub.s32 0, %v668
  %v670 = vrot.slane %v610, %v669
  %v671 = vlaneseq
  %v672 = vshrl.u32 %v671, 7
  %v673 = vsub.s32 0, %v672
  %v674 = vrot.slane %v612, %v673
  %v675 = vlaneseq
  %v676 = vshrl.u32 %v675, 7
  %v677 = vsub.s32 0, %v676
  %v678 = vrot.slane %v614, %v677
  %v679 = vld [vmem:[%s7] sm:$0xf]
  %vm680 = vcmask 31744
  %v681 = vsel %vm680, %v618, 0
  %v683 = vsel %vm680, %v622, 0
  %v685 = vsel %vm680, %v626, 0
  %v687 = vsel %vm680, %v630, 0
  %v689 = vsel %vm680, %v634, 0
  %v691 = vsel %vm680, %v638, 0
  %v693 = vsel %vm680, %v642, 0
  %v695 = vsel %vm680, %v646, 0
  %v697 = vsel %vm680, %v650, 0
  %v699 = vsel %vm680, %v654, 0
  %v701 = vsel %vm680, %v658, 0
  %v703 = vsel %vm680, %v662, 0
  %v705 = vsel %vm680, %v666, 0
  %v707 = vsel %vm680, %v670, 0
  %v709 = vsel %vm680, %v674, 0
  %v711 = vsel %vm680, %v678, 0
  %vm713 = vcmask 1043456
  %v715 = vsel %vm713, %v679, 0
  %717 = vmatprep.subr.mxu0 0.0
  %718 = vmatpush1.msra.mxu0 0.0
  %719 = vmatprep.subr.mxu0 0.0
  %720 = vmatpush1.msra.mxu0 0.0
  %721 = vmatprep.subr.mxu0 0.0
  %722 = vmatpush1.msra.mxu0 0.0
  %723 = vmatprep.subr.mxu0 0.0
  %724 = vmatpush1.msra.mxu0 0.0
  %725 = vmatprep.subr.mxu0 0.0
  %726 = vmatpush1.msra.mxu0 0.0
  %727 = vmatprep.subr.mxu0 0.0
  %728 = vmatpush1.msra.mxu0 0.0
  %729 = vmatprep.subr.mxu0 0.0
  %730 = vmatpush1.msra.mxu0 0.0
  %731 = vmatprep.subr.mxu0 0.0
  %732 = vmatpush1.msra.mxu0 0.0
  %733 = vmatprep.subr.mxu0 0.0
  %734 = vmatpush1.msra.mxu0 0.0
  %735 = vmatprep.subr.mxu0 0.0
  %736 = vmatpush1.msra.mxu0 0.0
  %737 = vmatprep.subr.mxu0 0.0
  %738 = vmatpush1.msra.mxu0 0.0
  %739 = vmatprep.subr.mxu0 0.0
  %740 = vmatpush1.msra.mxu0 0.0
  %741 = vmatprep.subr.mxu0 0.0
  %742 = vmatpush1.msra.mxu0 0.0
  %743 = vmatprep.subr.mxu0 0.0
  %744 = vmatpush1.msra.mxu0 0.0
  %745 = vmatprep.subr.mxu0 0.0
  %746 = vmatpush1.msra.mxu0 0.0
  %747 = vmatprep.subr.mxu0 0.0
  %748 = vmatpush1.msra.mxu0 %v715
  %749 = vmatprep.subr.mxu0 0.0
  %750 = vmatpush2.msra.mxu0 0.0
  %751 = vmatprep.subr.mxu0 0.0
  %752 = vmatpush2.msra.mxu0 0.0
  %753 = vmatprep.subr.mxu0 0.0
  %754 = vmatpush2.msra.mxu0 0.0
  %755 = vmatprep.subr.mxu0 0.0
  %756 = vmatpush2.msra.mxu0 0.0
  %757 = vmatprep.subr.mxu0 0.0
  %758 = vmatpush2.msra.mxu0 0.0
  %759 = vmatprep.subr.mxu0 0.0
  %760 = vmatpush2.msra.mxu0 0.0
  %761 = vmatprep.subr.mxu0 0.0
  %762 = vmatpush2.msra.mxu0 0.0
  %763 = vmatprep.subr.mxu0 0.0
  %764 = vmatpush2.msra.mxu0 0.0
  %765 = vmatprep.subr.mxu0 0.0
  %766 = vmatpush2.msra.mxu0 0.0
  %767 = vmatprep.subr.mxu0 0.0
  %768 = vmatpush2.msra.mxu0 0.0
  %769 = vmatprep.subr.mxu0 0.0
  %770 = vmatpush2.msra.mxu0 0.0
  %771 = vmatprep.subr.mxu0 0.0
  %772 = vmatpush2.msra.mxu0 0.0
  %773 = vmatprep.subr.mxu0 0.0
  %774 = vmatpush2.msra.mxu0 0.0
  %775 = vmatprep.subr.mxu0 0.0
  %776 = vmatpush2.msra.mxu0 0.0
  %777 = vmatprep.subr.mxu0 0.0
  %778 = vmatpush2.msra.mxu0 0.0
  %779 = vmatprep.subr.mxu0 0.0
  %780 = vmatpush2.msra.mxu0 0.0
  %781 = vmatprep.mubr.f32.mxu0 0.0
  %782 = vmatmul.mubr.f32.gmra.mxu0 %v681
  %v783 = vpop.f32.mrf.mxu0
  %v784 = vadd.f32 0.0, %v783
  %v785 = vpop.f32.mrf.mxu0
  %786 = vmatprep.mubr.f32.mxu0 0.0
  %787 = vmatmul.mubr.f32.gmra.mxu0 %v683
  %v788 = vpop.f32.mrf.mxu0
  %v789 = vadd.f32 0.0, %v788
  %v790 = vpop.f32.mrf.mxu0
  %791 = vmatprep.mubr.f32.mxu0 0.0
  %792 = vmatmul.mubr.f32.gmra.mxu0 %v685
  %v793 = vpop.f32.mrf.mxu0
  %v794 = vadd.f32 0.0, %v793
  %v795 = vpop.f32.mrf.mxu0
  %796 = vmatprep.mubr.f32.mxu0 0.0
  %797 = vmatmul.mubr.f32.gmra.mxu0 %v687
  %v798 = vpop.f32.mrf.mxu0
  %v799 = vadd.f32 0.0, %v798
  %v800 = vpop.f32.mrf.mxu0
  %801 = vmatprep.mubr.f32.mxu0 0.0
  %802 = vmatmul.mubr.f32.gmra.mxu0 %v689
  %v803 = vpop.f32.mrf.mxu0
  %v804 = vadd.f32 0.0, %v803
  %v805 = vpop.f32.mrf.mxu0
  %806 = vmatprep.mubr.f32.mxu0 0.0
  %807 = vmatmul.mubr.f32.gmra.mxu0 %v691
  %v808 = vpop.f32.mrf.mxu0
  %v809 = vadd.f32 0.0, %v808
  %v810 = vpop.f32.mrf.mxu0
  %811 = vmatprep.mubr.f32.mxu0 0.0
  %812 = vmatmul.mubr.f32.gmra.mxu0 %v693
  %v813 = vpop.f32.mrf.mxu0
  %v814 = vadd.f32 0.0, %v813
  %v815 = vpop.f32.mrf.mxu0
  %816 = vmatprep.mubr.f32.mxu0 0.0
  %817 = vmatmul.mubr.f32.gmra.mxu0 %v695
  %v818 = vpop.f32.mrf.mxu0
  %v819 = vadd.f32 0.0, %v818
  %v820 = vpop.f32.mrf.mxu0
  %821 = vmatprep.mubr.f32.mxu0 0.0
  %822 = vmatmul.mubr.f32.gmra.mxu0 %v697
  %v823 = vpop.f32.mrf.mxu0
  %v824 = vadd.f32 0.0, %v823
  %v825 = vpop.f32.mrf.mxu0
  %826 = vmatprep.mubr.f32.mxu0 0.0
  %827 = vmatmul.mubr.f32.gmra.mxu0 %v699
  %v828 = vpop.f32.mrf.mxu0
  %v829 = vadd.f32 0.0, %v828
  %v830 = vpop.f32.mrf.mxu0
  %831 = vmatprep.mubr.f32.mxu0 0.0
  %832 = vmatmul.mubr.f32.gmra.mxu0 %v701
  %v833 = vpop.f32.mrf.mxu0
  %v834 = vadd.f32 0.0, %v833
  %v835 = vpop.f32.mrf.mxu0
  %836 = vmatprep.mubr.f32.mxu0 0.0
  %837 = vmatmul.mubr.f32.gmra.mxu0 %v703
  %v838 = vpop.f32.mrf.mxu0
  %v839 = vadd.f32 0.0, %v838
  %v840 = vpop.f32.mrf.mxu0
  %841 = vmatprep.mubr.f32.mxu0 0.0
  %842 = vmatmul.mubr.f32.gmra.mxu0 %v705
  %v843 = vpop.f32.mrf.mxu0
  %v844 = vadd.f32 0.0, %v843
  %v845 = vpop.f32.mrf.mxu0
  %846 = vmatprep.mubr.f32.mxu0 0.0
  %847 = vmatmul.mubr.f32.gmra.mxu0 %v707
  %v848 = vpop.f32.mrf.mxu0
  %v849 = vadd.f32 0.0, %v848
  %v850 = vpop.f32.mrf.mxu0
  %851 = vmatprep.mubr.f32.mxu0 0.0
  %852 = vmatmul.mubr.f32.gmra.mxu0 %v709
  %v853 = vpop.f32.mrf.mxu0
  %v854 = vadd.f32 0.0, %v853
  %v855 = vpop.f32.mrf.mxu0
  %856 = vmatprep.mubr.f32.mxu0 0.0
  %857 = vmatmul.mubr.f32.gmra.mxu0 %v711
  %v858 = vpop.f32.mrf.mxu0
  %v859 = vadd.f32 0.0, %v858
  %v860 = vpop.f32.mrf.mxu0
  %861 = vdwg.mxu0
  %v862 = vld [vmem:[%s8] sm:$0xff]
  %v863 = vld [vmem:[%s8 + $0x8] sm:$0xff]
  %v864 = vld [vmem:[%s8 + $0x10] sm:$0xff]
  %v865 = vld [vmem:[%s8 + $0x18] sm:$0xff]
  %v867 = vsel %vm303, %v497, 0
  %v870 = vsel %vm303, %v498, 0
  %v873 = vsel %vm303, %v499, 0
  %v876 = vsel %vm303, %v500, 0
  %v879 = vsel %vm303, %v501, 0
  %v882 = vsel %vm303, %v502, 0
  %v885 = vsel %vm303, %v503, 0
  %v888 = vsel %vm303, %v504, 0
  %v891 = vsel %vm303, %v505, 0
  %v894 = vsel %vm303, %v506, 0
  %v897 = vsel %vm303, %v507, 0
  %v900 = vsel %vm303, %v508, 0
  %v903 = vsel %vm303, %v509, 0
  %v906 = vsel %vm303, %v510, 0
  %v909 = vsel %vm303, %v511, 0
  %v912 = vsel %vm303, %v512, 0
  %914 = vmatprep.subr.mxu0 0.0
  %915 = vmatpush1.msra.mxu0 0.0
  %916 = vmatprep.subr.mxu0 0.0
  %917 = vmatpush1.msra.mxu0 0.0
  %918 = vmatprep.subr.mxu0 0.0
  %919 = vmatpush1.msra.mxu0 0.0
  %920 = vmatprep.subr.mxu0 0.0
  %921 = vmatpush1.msra.mxu0 0.0
  %922 = vmatprep.subr.mxu0 0.0
  %923 = vmatpush1.msra.mxu0 0.0
  %924 = vmatprep.subr.mxu0 0.0
  %925 = vmatpush1.msra.mxu0 0.0
  %926 = vmatprep.subr.mxu0 0.0
  %927 = vmatpush1.msra.mxu0 0.0
  %928 = vmatprep.subr.mxu0 0.0
  %929 = vmatpush1.msra.mxu0 0.0
  %930 = vmatprep.subr.mxu0 0.0
  %931 = vmatpush1.msra.mxu0 0.0
  %932 = vmatprep.subr.mxu0 0.0
  %933 = vmatpush1.msra.mxu0 0.0
  %934 = vmatprep.subr.mxu0 0.0
  %935 = vmatpush1.msra.mxu0 0.0
  %936 = vmatprep.subr.mxu0 0.0
  %937 = vmatpush1.msra.mxu0 0.0
  %938 = vmatprep.subr.mxu0 0.0
  %939 = vmatpush1.msra.mxu0 %v865
  %940 = vmatprep.subr.mxu0 0.0
  %941 = vmatpush1.msra.mxu0 %v864
  %942 = vmatprep.subr.mxu0 0.0
  %943 = vmatpush1.msra.mxu0 %v863
  %944 = vmatprep.subr.mxu0 0.0
  %945 = vmatpush1.msra.mxu0 %v862
  %946 = vmatprep.subr.mxu0 0.0
  %947 = vmatpush2.msra.mxu0 0.0
  %948 = vmatprep.subr.mxu0 0.0
  %949 = vmatpush2.msra.mxu0 0.0
  %950 = vmatprep.subr.mxu0 0.0
  %951 = vmatpush2.msra.mxu0 0.0
  %952 = vmatprep.subr.mxu0 0.0
  %953 = vmatpush2.msra.mxu0 0.0
  %954 = vmatprep.subr.mxu0 0.0
  %955 = vmatpush2.msra.mxu0 0.0
  %956 = vmatprep.subr.mxu0 0.0
  %957 = vmatpush2.msra.mxu0 0.0
  %958 = vmatprep.subr.mxu0 0.0
  %959 = vmatpush2.msra.mxu0 0.0
  %960 = vmatprep.subr.mxu0 0.0
  %961 = vmatpush2.msra.mxu0 0.0
  %962 = vmatprep.subr.mxu0 0.0
  %963 = vmatpush2.msra.mxu0 0.0
  %964 = vmatprep.subr.mxu0 0.0
  %965 = vmatpush2.msra.mxu0 0.0
  %966 = vmatprep.subr.mxu0 0.0
  %967 = vmatpush2.msra.mxu0 0.0
  %968 = vmatprep.subr.mxu0 0.0
  %969 = vmatpush2.msra.mxu0 0.0
  %970 = vmatprep.subr.mxu0 0.0
  %971 = vmatpush2.msra.mxu0 0.0
  %972 = vmatprep.subr.mxu0 0.0
  %973 = vmatpush2.msra.mxu0 0.0
  %974 = vmatprep.subr.mxu0 0.0
  %975 = vmatpush2.msra.mxu0 0.0
  %976 = vmatprep.subr.mxu0 0.0
  %977 = vmatpush2.msra.mxu0 0.0
  %978 = vmatprep.mubr.f32.mxu0 0.0
  %979 = vmatmul.mubr.f32.gmra.mxu0 %v867
  %v980 = vpop.f32.mrf.mxu0
  %v981 = vadd.f32 0.0, %v980
  %v982 = vpop.f32.mrf.mxu0
  %983 = vmatprep.mubr.f32.mxu0 0.0
  %984 = vmatmul.mubr.f32.gmra.mxu0 %v870
  %v985 = vpop.f32.mrf.mxu0
  %v986 = vadd.f32 0.0, %v985
  %v987 = vpop.f32.mrf.mxu0
  %988 = vmatprep.mubr.f32.mxu0 0.0
  %989 = vmatmul.mubr.f32.gmra.mxu0 %v873
  %v990 = vpop.f32.mrf.mxu0
  %v991 = vadd.f32 0.0, %v990
  %v992 = vpop.f32.mrf.mxu0
  %993 = vmatprep.mubr.f32.mxu0 0.0
  %994 = vmatmul.mubr.f32.gmra.mxu0 %v876
  %v995 = vpop.f32.mrf.mxu0
  %v996 = vadd.f32 0.0, %v995
  %v997 = vpop.f32.mrf.mxu0
  %998 = vmatprep.mubr.f32.mxu0 0.0
  %999 = vmatmul.mubr.f32.gmra.mxu0 %v879
  %v1000 = vpop.f32.mrf.mxu0
  %v1001 = vadd.f32 0.0, %v1000
  %v1002 = vpop.f32.mrf.mxu0
  %1003 = vmatprep.mubr.f32.mxu0 0.0
  %1004 = vmatmul.mubr.f32.gmra.mxu0 %v882
  %v1005 = vpop.f32.mrf.mxu0
  %v1006 = vadd.f32 0.0, %v1005
  %v1007 = vpop.f32.mrf.mxu0
  %1008 = vmatprep.mubr.f32.mxu0 0.0
  %1009 = vmatmul.mubr.f32.gmra.mxu0 %v885
  %v1010 = vpop.f32.mrf.mxu0
  %v1011 = vadd.f32 0.0, %v1010
  %v1012 = vpop.f32.mrf.mxu0
  %1013 = vmatprep.mubr.f32.mxu0 0.0
  %1014 = vmatmul.mubr.f32.gmra.mxu0 %v888
  %v1015 = vpop.f32.mrf.mxu0
  %v1016 = vadd.f32 0.0, %v1015
  %v1017 = vpop.f32.mrf.mxu0
  %1018 = vmatprep.mubr.f32.mxu0 0.0
  %1019 = vmatmul.mubr.f32.gmra.mxu0 %v891
  %v1020 = vpop.f32.mrf.mxu0
  %v1021 = vadd.f32 0.0, %v1020
  %v1022 = vpop.f32.mrf.mxu0
  %1023 = vmatprep.mubr.f32.mxu0 0.0
  %1024 = vmatmul.mubr.f32.gmra.mxu0 %v894
  %v1025 = vpop.f32.mrf.mxu0
  %v1026 = vadd.f32 0.0, %v1025
  %v1027 = vpop.f32.mrf.mxu0
  %1028 = vmatprep.mubr.f32.mxu0 0.0
  %1029 = vmatmul.mubr.f32.gmra.mxu0 %v897
  %v1030 = vpop.f32.mrf.mxu0
  %v1031 = vadd.f32 0.0, %v1030
  %v1032 = vpop.f32.mrf.mxu0
  %1033 = vmatprep.mubr.f32.mxu0 0.0
  %1034 = vmatmul.mubr.f32.gmra.mxu0 %v900
  %v1035 = vpop.f32.mrf.mxu0
  %v1036 = vadd.f32 0.0, %v1035
  %v1037 = vpop.f32.mrf.mxu0
  %1038 = vmatprep.mubr.f32.mxu0 0.0
  %1039 = vmatmul.mubr.f32.gmra.mxu0 %v903
  %v1040 = vpop.f32.mrf.mxu0
  %v1041 = vadd.f32 0.0, %v1040
  %v1042 = vpop.f32.mrf.mxu0
  %1043 = vmatprep.mubr.f32.mxu0 0.0
  %1044 = vmatmul.mubr.f32.gmra.mxu0 %v906
  %v1045 = vpop.f32.mrf.mxu0
  %v1046 = vadd.f32 0.0, %v1045
  %v1047 = vpop.f32.mrf.mxu0
  %1048 = vmatprep.mubr.f32.mxu0 0.0
  %1049 = vmatmul.mubr.f32.gmra.mxu0 %v909
  %v1050 = vpop.f32.mrf.mxu0
  %v1051 = vadd.f32 0.0, %v1050
  %v1052 = vpop.f32.mrf.mxu0
  %1053 = vmatprep.mubr.f32.mxu0 0.0
  %1054 = vmatmul.mubr.f32.gmra.mxu0 %v912
  %v1055 = vpop.f32.mrf.mxu0
  %v1056 = vadd.f32 0.0, %v1055
  %v1057 = vpop.f32.mrf.mxu0
  %1058 = vdwg.mxu0
  %v1059 = vmul.f32 %v784, %v981
  %v1060 = vmul.f32 %v789, %v986
  %v1061 = vmul.f32 %v794, %v991
  %v1062 = vmul.f32 %v799, %v996
  %v1063 = vmul.f32 %v804, %v1001
  %v1064 = vmul.f32 %v809, %v1006
  %v1065 = vmul.f32 %v814, %v1011
  %v1066 = vmul.f32 %v819, %v1016
  %v1067 = vmul.f32 %v824, %v1021
  %v1068 = vmul.f32 %v829, %v1026
  %v1069 = vmul.f32 %v834, %v1031
  %v1070 = vmul.f32 %v839, %v1036
  %v1071 = vmul.f32 %v844, %v1041
  %v1072 = vmul.f32 %v849, %v1046
  %v1073 = vmul.f32 %v854, %v1051
  %v1074 = vmul.f32 %v859, %v1056
  %v1075 = vld [vmem:[%s9] sm:$0xff]
  %v1076 = vld [vmem:[%s9 + $0x8] sm:$0xff]
  %v1077 = vld [vmem:[%s9 + $0x10] sm:$0xff]
  %v1078 = vld [vmem:[%s9 + $0x18] sm:$0xff]
  %v1079 = vld [vmem:[%s9 + $0x20] sm:$0xff]
  %v1080 = vld [vmem:[%s9 + $0x28] sm:$0xff]
  %v1081 = vld [vmem:[%s9 + $0x30] sm:$0xff]
  %v1082 = vld [vmem:[%s9 + $0x38] sm:$0xff]
  %v1083 = vld [vmem:[%s9 + $0x40] sm:$0xff]
  %v1084 = vld [vmem:[%s9 + $0x48] sm:$0xff]
  %v1085 = vld [vmem:[%s9 + $0x50] sm:$0xff]
  %v1086 = vld [vmem:[%s9 + $0x58] sm:$0xff]
  %v1087 = vld [vmem:[%s9 + $0x60] sm:$0xff]
  %v1088 = vld [vmem:[%s9 + $0x68] sm:$0xff]
  %v1089 = vld [vmem:[%s9 + $0x70] sm:$0xff]
  %v1090 = vld [vmem:[%s9 + $0x78] sm:$0xff]
  %v1091 = vld [vmem:[%s10] sm:$0xf]
  %v1093 = vsel %vm713, %v1091, 0
  %1095 = vmatprep.subr.mxu0 0.0
  %1096 = vmatpush1.msra.mxu0 0.0
  %1097 = vmatprep.subr.mxu0 0.0
  %1098 = vmatpush1.msra.mxu0 0.0
  %1099 = vmatprep.subr.mxu0 0.0
  %1100 = vmatpush1.msra.mxu0 0.0
  %1101 = vmatprep.subr.mxu0 0.0
  %1102 = vmatpush1.msra.mxu0 0.0
  %1103 = vmatprep.subr.mxu0 0.0
  %1104 = vmatpush1.msra.mxu0 0.0
  %1105 = vmatprep.subr.mxu0 0.0
  %1106 = vmatpush1.msra.mxu0 0.0
  %1107 = vmatprep.subr.mxu0 0.0
  %1108 = vmatpush1.msra.mxu0 0.0
  %1109 = vmatprep.subr.mxu0 0.0
  %1110 = vmatpush1.msra.mxu0 0.0
  %1111 = vmatprep.subr.mxu0 0.0
  %1112 = vmatpush1.msra.mxu0 0.0
  %1113 = vmatprep.subr.mxu0 0.0
  %1114 = vmatpush1.msra.mxu0 0.0
  %1115 = vmatprep.subr.mxu0 0.0
  %1116 = vmatpush1.msra.mxu0 0.0
  %1117 = vmatprep.subr.mxu0 0.0
  %1118 = vmatpush1.msra.mxu0 0.0
  %1119 = vmatprep.subr.mxu0 0.0
  %1120 = vmatpush1.msra.mxu0 0.0
  %1121 = vmatprep.subr.mxu0 0.0
  %1122 = vmatpush1.msra.mxu0 0.0
  %1123 = vmatprep.subr.mxu0 0.0
  %1124 = vmatpush1.msra.mxu0 0.0
  %1125 = vmatprep.subr.mxu0 0.0
  %1126 = vmatpush1.msra.mxu0 %v1093
  %1127 = vmatprep.subr.mxu0 0.0
  %1128 = vmatpush2.msra.mxu0 0.0
  %1129 = vmatprep.subr.mxu0 0.0
  %1130 = vmatpush2.msra.mxu0 0.0
  %1131 = vmatprep.subr.mxu0 0.0
  %1132 = vmatpush2.msra.mxu0 0.0
  %1133 = vmatprep.subr.mxu0 0.0
  %1134 = vmatpush2.msra.mxu0 0.0
  %1135 = vmatprep.subr.mxu0 0.0
  %1136 = vmatpush2.msra.mxu0 0.0
  %1137 = vmatprep.subr.mxu0 0.0
  %1138 = vmatpush2.msra.mxu0 0.0
  %1139 = vmatprep.subr.mxu0 0.0
  %1140 = vmatpush2.msra.mxu0 0.0
  %1141 = vmatprep.subr.mxu0 0.0
  %1142 = vmatpush2.msra.mxu0 0.0
  %1143 = vmatprep.subr.mxu0 0.0
  %1144 = vmatpush2.msra.mxu0 0.0
  %1145 = vmatprep.subr.mxu0 0.0
  %1146 = vmatpush2.msra.mxu0 0.0
  %1147 = vmatprep.subr.mxu0 0.0
  %1148 = vmatpush2.msra.mxu0 0.0
  %1149 = vmatprep.subr.mxu0 0.0
  %1150 = vmatpush2.msra.mxu0 0.0
  %1151 = vmatprep.subr.mxu0 0.0
  %1152 = vmatpush2.msra.mxu0 0.0
  %1153 = vmatprep.subr.mxu0 0.0
  %1154 = vmatpush2.msra.mxu0 0.0
  %1155 = vmatprep.subr.mxu0 0.0
  %1156 = vmatpush2.msra.mxu0 0.0
  %1157 = vmatprep.subr.mxu0 0.0
  %1158 = vmatpush2.msra.mxu0 0.0
  %1159 = vmatprep.mubr.f32.mxu0 0.0
  %1160 = vmatmul.mubr.f32.gmra.mxu0 %v681
  %v1161 = vpop.f32.mrf.mxu0
  %v1162 = vadd.f32 0.0, %v1161
  %v1163 = vpop.f32.mrf.mxu0
  %1164 = vmatprep.mubr.f32.mxu0 0.0
  %1165 = vmatmul.mubr.f32.gmra.mxu0 %v683
  %v1166 = vpop.f32.mrf.mxu0
  %v1167 = vadd.f32 0.0, %v1166
  %v1168 = vpop.f32.mrf.mxu0
  %1169 = vmatprep.mubr.f32.mxu0 0.0
  %1170 = vmatmul.mubr.f32.gmra.mxu0 %v685
  %v1171 = vpop.f32.mrf.mxu0
  %v1172 = vadd.f32 0.0, %v1171
  %v1173 = vpop.f32.mrf.mxu0
  %1174 = vmatprep.mubr.f32.mxu0 0.0
  %1175 = vmatmul.mubr.f32.gmra.mxu0 %v687
  %v1176 = vpop.f32.mrf.mxu0
  %v1177 = vadd.f32 0.0, %v1176
  %v1178 = vpop.f32.mrf.mxu0
  %1179 = vmatprep.mubr.f32.mxu0 0.0
  %1180 = vmatmul.mubr.f32.gmra.mxu0 %v689
  %v1181 = vpop.f32.mrf.mxu0
  %v1182 = vadd.f32 0.0, %v1181
  %v1183 = vpop.f32.mrf.mxu0
  %1184 = vmatprep.mubr.f32.mxu0 0.0
  %1185 = vmatmul.mubr.f32.gmra.mxu0 %v691
  %v1186 = vpop.f32.mrf.mxu0
  %v1187 = vadd.f32 0.0, %v1186
  %v1188 = vpop.f32.mrf.mxu0
  %1189 = vmatprep.mubr.f32.mxu0 0.0
  %1190 = vmatmul.mubr.f32.gmra.mxu0 %v693
  %v1191 = vpop.f32.mrf.mxu0
  %v1192 = vadd.f32 0.0, %v1191
  %v1193 = vpop.f32.mrf.mxu0
  %1194 = vmatprep.mubr.f32.mxu0 0.0
  %1195 = vmatmul.mubr.f32.gmra.mxu0 %v695
  %v1196 = vpop.f32.mrf.mxu0
  %v1197 = vadd.f32 0.0, %v1196
  %v1198 = vpop.f32.mrf.mxu0
  %1199 = vmatprep.mubr.f32.mxu0 0.0
  %1200 = vmatmul.mubr.f32.gmra.mxu0 %v697
  %v1201 = vpop.f32.mrf.mxu0
  %v1202 = vadd.f32 0.0, %v1201
  %v1203 = vpop.f32.mrf.mxu0
  %1204 = vmatprep.mubr.f32.mxu0 0.0
  %1205 = vmatmul.mubr.f32.gmra.mxu0 %v699
  %v1206 = vpop.f32.mrf.mxu0
  %v1207 = vadd.f32 0.0, %v1206
  %v1208 = vpop.f32.mrf.mxu0
  %1209 = vmatprep.mubr.f32.mxu0 0.0
  %1210 = vmatmul.mubr.f32.gmra.mxu0 %v701
  %v1211 = vpop.f32.mrf.mxu0
  %v1212 = vadd.f32 0.0, %v1211
  %v1213 = vpop.f32.mrf.mxu0
  %1214 = vmatprep.mubr.f32.mxu0 0.0
  %1215 = vmatmul.mubr.f32.gmra.mxu0 %v703
  %v1216 = vpop.f32.mrf.mxu0
  %v1217 = vadd.f32 0.0, %v1216
  %v1218 = vpop.f32.mrf.mxu0
  %1219 = vmatprep.mubr.f32.mxu0 0.0
  %1220 = vmatmul.mubr.f32.gmra.mxu0 %v705
  %v1221 = vpop.f32.mrf.mxu0
  %v1222 = vadd.f32 0.0, %v1221
  %v1223 = vpop.f32.mrf.mxu0
  %1224 = vmatprep.mubr.f32.mxu0 0.0
  %1225 = vmatmul.mubr.f32.gmra.mxu0 %v707
  %v1226 = vpop.f32.mrf.mxu0
  %v1227 = vadd.f32 0.0, %v1226
  %v1228 = vpop.f32.mrf.mxu0
  %1229 = vmatprep.mubr.f32.mxu0 0.0
  %1230 = vmatmul.mubr.f32.gmra.mxu0 %v709
  %v1231 = vpop.f32.mrf.mxu0
  %v1232 = vadd.f32 0.0, %v1231
  %v1233 = vpop.f32.mrf.mxu0
  %1234 = vmatprep.mubr.f32.mxu0 0.0
  %1235 = vmatmul.mubr.f32.gmra.mxu0 %v711
  %v1236 = vpop.f32.mrf.mxu0
  %v1237 = vadd.f32 0.0, %v1236
  %v1238 = vpop.f32.mrf.mxu0
  %1239 = vdwg.mxu0
  %1240 = vmatprep.subr.mxu0 0.0
  %1241 = vmatpush1.msra.mxu0 %v1090
  %1242 = vmatprep.subr.mxu0 0.0
  %1243 = vmatpush1.msra.mxu0 %v1089
  %1244 = vmatprep.subr.mxu0 0.0
  %1245 = vmatpush1.msra.mxu0 %v1088
  %1246 = vmatprep.subr.mxu0 0.0
  %1247 = vmatpush1.msra.mxu0 %v1087
  %1248 = vmatprep.subr.mxu0 0.0
  %1249 = vmatpush1.msra.mxu0 %v1086
  %1250 = vmatprep.subr.mxu0 0.0
  %1251 = vmatpush1.msra.mxu0 %v1085
  %1252 = vmatprep.subr.mxu0 0.0
  %1253 = vmatpush1.msra.mxu0 %v1084
  %1254 = vmatprep.subr.mxu0 0.0
  %1255 = vmatpush1.msra.mxu0 %v1083
  %1256 = vmatprep.subr.mxu0 0.0
  %1257 = vmatpush1.msra.mxu0 %v1082
  %1258 = vmatprep.subr.mxu0 0.0
  %1259 = vmatpush1.msra.mxu0 %v1081
  %1260 = vmatprep.subr.mxu0 0.0
  %1261 = vmatpush1.msra.mxu0 %v1080
  %1262 = vmatprep.subr.mxu0 0.0
  %1263 = vmatpush1.msra.mxu0 %v1079
  %1264 = vmatprep.subr.mxu0 0.0
  %1265 = vmatpush1.msra.mxu0 %v1078
  %1266 = vmatprep.subr.mxu0 0.0
  %1267 = vmatpush1.msra.mxu0 %v1077
  %1268 = vmatprep.subr.mxu0 0.0
  %1269 = vmatpush1.msra.mxu0 %v1076
  %1270 = vmatprep.subr.mxu0 0.0
  %1271 = vmatpush1.msra.mxu0 %v1075
  %1272 = vmatprep.subr.mxu0 0.0
  %1273 = vmatpush2.msra.mxu0 0.0
  %1274 = vmatprep.subr.mxu0 0.0
  %1275 = vmatpush2.msra.mxu0 0.0
  %1276 = vmatprep.subr.mxu0 0.0
  %1277 = vmatpush2.msra.mxu0 0.0
  %1278 = vmatprep.subr.mxu0 0.0
  %1279 = vmatpush2.msra.mxu0 0.0
  %1280 = vmatprep.subr.mxu0 0.0
  %1281 = vmatpush2.msra.mxu0 0.0
  %1282 = vmatprep.subr.mxu0 0.0
  %1283 = vmatpush2.msra.mxu0 0.0
  %1284 = vmatprep.subr.mxu0 0.0
  %1285 = vmatpush2.msra.mxu0 0.0
  %1286 = vmatprep.subr.mxu0 0.0
  %1287 = vmatpush2.msra.mxu0 0.0
  %1288 = vmatprep.subr.mxu0 0.0
  %1289 = vmatpush2.msra.mxu0 0.0
  %1290 = vmatprep.subr.mxu0 0.0
  %1291 = vmatpush2.msra.mxu0 0.0
  %1292 = vmatprep.subr.mxu0 0.0
  %1293 = vmatpush2.msra.mxu0 0.0
  %1294 = vmatprep.subr.mxu0 0.0
  %1295 = vmatpush2.msra.mxu0 0.0
  %1296 = vmatprep.subr.mxu0 0.0
  %1297 = vmatpush2.msra.mxu0 0.0
  %1298 = vmatprep.subr.mxu0 0.0
  %1299 = vmatpush2.msra.mxu0 0.0
  %1300 = vmatprep.subr.mxu0 0.0
  %1301 = vmatpush2.msra.mxu0 0.0
  %1302 = vmatprep.subr.mxu0 0.0
  %1303 = vmatpush2.msra.mxu0 0.0
  %1304 = vmatprep.mubr.f32.mxu0 0.0
  %1305 = vmatmul.mubr.f32.gmra.mxu0 %v1059
  %v1306 = vpop.f32.mrf.mxu0
  %v1307 = vadd.f32 %v1162, %v1306
  %v1308 = vpop.f32.mrf.mxu0
  %1309 = vmatprep.mubr.f32.mxu0 0.0
  %1310 = vmatmul.mubr.f32.gmra.mxu0 %v1060
  %v1311 = vpop.f32.mrf.mxu0
  %v1312 = vadd.f32 %v1167, %v1311
  %v1313 = vpop.f32.mrf.mxu0
  %1314 = vmatprep.mubr.f32.mxu0 0.0
  %1315 = vmatmul.mubr.f32.gmra.mxu0 %v1061
  %v1316 = vpop.f32.mrf.mxu0
  %v1317 = vadd.f32 %v1172, %v1316
  %v1318 = vpop.f32.mrf.mxu0
  %1319 = vmatprep.mubr.f32.mxu0 0.0
  %1320 = vmatmul.mubr.f32.gmra.mxu0 %v1062
  %v1321 = vpop.f32.mrf.mxu0
  %v1322 = vadd.f32 %v1177, %v1321
  %v1323 = vpop.f32.mrf.mxu0
  %1324 = vmatprep.mubr.f32.mxu0 0.0
  %1325 = vmatmul.mubr.f32.gmra.mxu0 %v1063
  %v1326 = vpop.f32.mrf.mxu0
  %v1327 = vadd.f32 %v1182, %v1326
  %v1328 = vpop.f32.mrf.mxu0
  %1329 = vmatprep.mubr.f32.mxu0 0.0
  %1330 = vmatmul.mubr.f32.gmra.mxu0 %v1064
  %v1331 = vpop.f32.mrf.mxu0
  %v1332 = vadd.f32 %v1187, %v1331
  %v1333 = vpop.f32.mrf.mxu0
  %1334 = vmatprep.mubr.f32.mxu0 0.0
  %1335 = vmatmul.mubr.f32.gmra.mxu0 %v1065
  %v1336 = vpop.f32.mrf.mxu0
  %v1337 = vadd.f32 %v1192, %v1336
  %v1338 = vpop.f32.mrf.mxu0
  %1339 = vmatprep.mubr.f32.mxu0 0.0
  %1340 = vmatmul.mubr.f32.gmra.mxu0 %v1066
  %v1341 = vpop.f32.mrf.mxu0
  %v1342 = vadd.f32 %v1197, %v1341
  %v1343 = vpop.f32.mrf.mxu0
  %1344 = vmatprep.mubr.f32.mxu0 0.0
  %1345 = vmatmul.mubr.f32.gmra.mxu0 %v1067
  %v1346 = vpop.f32.mrf.mxu0
  %v1347 = vadd.f32 %v1202, %v1346
  %v1348 = vpop.f32.mrf.mxu0
  %1349 = vmatprep.mubr.f32.mxu0 0.0
  %1350 = vmatmul.mubr.f32.gmra.mxu0 %v1068
  %v1351 = vpop.f32.mrf.mxu0
  %v1352 = vadd.f32 %v1207, %v1351
  %v1353 = vpop.f32.mrf.mxu0
  %1354 = vmatprep.mubr.f32.mxu0 0.0
  %1355 = vmatmul.mubr.f32.gmra.mxu0 %v1069
  %v1356 = vpop.f32.mrf.mxu0
  %v1357 = vadd.f32 %v1212, %v1356
  %v1358 = vpop.f32.mrf.mxu0
  %1359 = vmatprep.mubr.f32.mxu0 0.0
  %1360 = vmatmul.mubr.f32.gmra.mxu0 %v1070
  %v1361 = vpop.f32.mrf.mxu0
  %v1362 = vadd.f32 %v1217, %v1361
  %v1363 = vpop.f32.mrf.mxu0
  %1364 = vmatprep.mubr.f32.mxu0 0.0
  %1365 = vmatmul.mubr.f32.gmra.mxu0 %v1071
  %v1366 = vpop.f32.mrf.mxu0
  %v1367 = vadd.f32 %v1222, %v1366
  %v1368 = vpop.f32.mrf.mxu0
  %1369 = vmatprep.mubr.f32.mxu0 0.0
  %1370 = vmatmul.mubr.f32.gmra.mxu0 %v1072
  %v1371 = vpop.f32.mrf.mxu0
  %v1372 = vadd.f32 %v1227, %v1371
  %v1373 = vpop.f32.mrf.mxu0
  %1374 = vmatprep.mubr.f32.mxu0 0.0
  %1375 = vmatmul.mubr.f32.gmra.mxu0 %v1073
  %v1376 = vpop.f32.mrf.mxu0
  %v1377 = vadd.f32 %v1232, %v1376
  %v1378 = vpop.f32.mrf.mxu0
  %1379 = vmatprep.mubr.f32.mxu0 0.0
  %1380 = vmatmul.mubr.f32.gmra.mxu0 %v1074
  %v1381 = vpop.f32.mrf.mxu0
  %v1382 = vadd.f32 %v1237, %v1381
  %v1383 = vpop.f32.mrf.mxu0
  %1384 = vdwg.mxu0
  %1386 = vset.pattern.permute.xlu0 0
  %1387 = vperm.xlu0 %1386, %v38
  %v1388 = vpop.permute.xlu0 %1387
  %1391 = vset.pattern.permute.xlu0 0
  %1392 = vperm.xlu0 %1391, %v39
  %v1393 = vpop.permute.xlu0 %1392
  %1396 = vset.pattern.permute.xlu0 0
  %1397 = vperm.xlu0 %1396, %v40
  %v1398 = vpop.permute.xlu0 %1397
  %1401 = vset.pattern.permute.xlu0 0
  %1402 = vperm.xlu0 %1401, %v41
  %v1403 = vpop.permute.xlu0 %1402
  %1406 = vset.pattern.permute.xlu0 0
  %1407 = vperm.xlu0 %1406, %v42
  %v1408 = vpop.permute.xlu0 %1407
  %1411 = vset.pattern.permute.xlu0 0
  %1412 = vperm.xlu0 %1411, %v43
  %v1413 = vpop.permute.xlu0 %1412
  %1416 = vset.pattern.permute.xlu0 0
  %1417 = vperm.xlu0 %1416, %v44
  %v1418 = vpop.permute.xlu0 %1417
  %1421 = vset.pattern.permute.xlu0 0
  %1422 = vperm.xlu0 %1421, %v45
  %v1423 = vpop.permute.xlu0 %1422
  %1426 = vset.pattern.permute.xlu0 0
  %1427 = vperm.xlu0 %1426, %v46
  %v1428 = vpop.permute.xlu0 %1427
  %1431 = vset.pattern.permute.xlu0 0
  %1432 = vperm.xlu0 %1431, %v47
  %v1433 = vpop.permute.xlu0 %1432
  %1436 = vset.pattern.permute.xlu0 0
  %1437 = vperm.xlu0 %1436, %v48
  %v1438 = vpop.permute.xlu0 %1437
  %1441 = vset.pattern.permute.xlu0 0
  %1442 = vperm.xlu0 %1441, %v49
  %v1443 = vpop.permute.xlu0 %1442
  %1446 = vset.pattern.permute.xlu0 0
  %1447 = vperm.xlu0 %1446, %v50
  %v1448 = vpop.permute.xlu0 %1447
  %1451 = vset.pattern.permute.xlu0 0
  %1452 = vperm.xlu0 %1451, %v51
  %v1453 = vpop.permute.xlu0 %1452
  %1456 = vset.pattern.permute.xlu0 0
  %1457 = vperm.xlu0 %1456, %v52
  %v1458 = vpop.permute.xlu0 %1457
  %1461 = vset.pattern.permute.xlu0 0
  %1462 = vperm.xlu0 %1461, %v53
  %v1463 = vpop.permute.xlu0 %1462
  %v1465 = vmul.f32 %v1307, %v1388
  %v1466 = vmul.f32 %v1312, %v1393
  %v1467 = vmul.f32 %v1317, %v1398
  %v1468 = vmul.f32 %v1322, %v1403
  %v1469 = vmul.f32 %v1327, %v1408
  %v1470 = vmul.f32 %v1332, %v1413
  %v1471 = vmul.f32 %v1337, %v1418
  %v1472 = vmul.f32 %v1342, %v1423
  %v1473 = vmul.f32 %v1347, %v1428
  %v1474 = vmul.f32 %v1352, %v1433
  %v1475 = vmul.f32 %v1357, %v1438
  %v1476 = vmul.f32 %v1362, %v1443
  %v1477 = vmul.f32 %v1367, %v1448
  %v1478 = vmul.f32 %v1372, %v1453
  %v1479 = vmul.f32 %v1377, %v1458
  %v1480 = vmul.f32 %v1382, %v1463
  %vm1481 = vcmask 64512
  %1482 = vst.msk [vmem:[%s11] sm:$0xff] %vm1481, %v1465
  %1483 = vst.msk [vmem:[%s11 + $0x8] sm:$0xff] %vm1481, %v1466
  %1484 = vst.msk [vmem:[%s11 + $0x10] sm:$0xff] %vm1481, %v1467
  %1485 = vst.msk [vmem:[%s11 + $0x18] sm:$0xff] %vm1481, %v1468
  %1486 = vst.msk [vmem:[%s11 + $0x20] sm:$0xff] %vm1481, %v1469
  %1487 = vst.msk [vmem:[%s11 + $0x28] sm:$0xff] %vm1481, %v1470
  %1488 = vst.msk [vmem:[%s11 + $0x30] sm:$0xff] %vm1481, %v1471
  %1489 = vst.msk [vmem:[%s11 + $0x38] sm:$0xff] %vm1481, %v1472
  %1490 = vst.msk [vmem:[%s11 + $0x40] sm:$0xff] %vm1481, %v1473
  %1491 = vst.msk [vmem:[%s11 + $0x48] sm:$0xff] %vm1481, %v1474
  %1492 = vst.msk [vmem:[%s11 + $0x50] sm:$0xff] %vm1481, %v1475
  %1493 = vst.msk [vmem:[%s11 + $0x58] sm:$0xff] %vm1481, %v1476
  %1494 = vst.msk [vmem:[%s11 + $0x60] sm:$0xff] %vm1481, %v1477
  %1495 = vst.msk [vmem:[%s11 + $0x68] sm:$0xff] %vm1481, %v1478
  %1496 = vst.msk [vmem:[%s11 + $0x70] sm:$0xff] %vm1481, %v1479
  %1497 = vst.msk [vmem:[%s11 + $0x78] sm:$0xff] %vm1481, %v1480
  // Predicated region
  $region46: #{tpu_custom_call.1} parent=0 // pred_check
    _
  $region47: #{tpu_custom_call.1} parent=0 // pred_check_branch
    %1499 = sbr.rel (0) target = $region49
  $region48: #{tpu_custom_call.1} parent=0 // pred_region
    _
  $region49: #{tpu_custom_call.1} parent=0 // pred_fallthru
    _
  // Predicated region
  $region50: #{tpu_custom_call.1} parent=0 // pred_check
    _
  $region51: #{tpu_custom_call.1} parent=0 // pred_check_branch
    %1501 = sbr.rel (0) target = $region53
  $region52: #{tpu_custom_call.1} parent=0 // pred_region
    _
  $region53: #{tpu_custom_call.1} parent=0 // pred_fallthru
    _

</llo_original>
